<compile_context>
chip_gen: v6e
topology: v6e:2x2x1
jax: 0.10.0
libtpu: 0.0.40
codegen_flags: <defaults>
</compile_context>

<pallas_src>
import functools
import numpy as np
import jax
import jax.numpy as jnp
from jax import lax
from jax.experimental import pallas as pl
from jax.experimental.pallas import tpu as pltpu


def _round_up(x, m):
    return ((x + m - 1) // m) * m


# Decision heads in a fixed order: index into the stacked head weights and the
# per-step head-id schedule.
_HEAD_ORDER = ('network_type', 'layer_count', 'filter', 'kernel',
               'hidden_units', 'activation', 'skip', 'batch_norm')
_HEAD_INDEX = {name: i for i, name in enumerate(_HEAD_ORDER)}

_CNN_TYPES = ('cnn', 'resnet', 'mobilenet', 'densenet', 'shufflenetv2', 'efficientnet')
_MLP_TYPES = ('mlp', 'enhanced_mlp')


def _controller_steps_kernel(head_ids_ref,                       # SMEM (S,) i32 schedule
                             h0_ref, c0_ref,                     # VMEM (BP,HP) f32
                             whh_ref, b_ref,                     # VMEM (HP,4HP) bf16 / (1,4HP) f32
                             whead_ref, bhead_ref,               # VMEM (NH,HP,KP) bf16 / (NH,1,KP) f32
                             h_out, c_out, step_out,             # VMEM outputs
                             *, num_steps, unroll):
    BP, HP = h0_ref.shape
    KP = step_out.shape[-1]
    wdt = whh_ref.dtype

    # Loop-invariant values hoisted out of the step loop (JAX does not CSE
    # broadcast_in_dim / iota).
    b_eff = jnp.broadcast_to(b_ref[...], (BP, 4 * HP))
    lane = jax.lax.broadcasted_iota(jnp.int32, (BP, KP), 1)

    def step(t, carry):
        h, c = carry

        # One LSTM step.  gates = h @ W_hh^T + b_eff  (the constant start-token
        # x @ W_ih term is folded into b_eff on the host).  bf16 MXU operands,
        # f32 accumulation; all elementwise math stays f32.
        gates = jnp.dot(h.astype(wdt), whh_ref[...],
                        preferred_element_type=jnp.float32) + b_eff
        i_g = jax.nn.sigmoid(gates[:, 0 * HP:1 * HP])
        f_g = jax.nn.sigmoid(gates[:, 1 * HP:2 * HP])
        g_g = jnp.tanh(gates[:, 2 * HP:3 * HP])
        o_g = jax.nn.sigmoid(gates[:, 3 * HP:4 * HP])
        c_new = f_g * c + i_g * g_g
        h_new = o_g * jnp.tanh(c_new)

        # Per-step decision head, selected from the VMEM-resident head stack by
        # a dynamic leading-axis index.  Padded class lanes carry bias -1e9.
        hid = head_ids_ref[t]
        w_head = whead_ref[hid]                  # (HP, KP)
        b_head = bhead_ref[hid]                  # (1, KP)
        logits = jnp.dot(h_new.astype(wdt), w_head,
                         preferred_element_type=jnp.float32) + b_head

        # Exact log-softmax bookkeeping.  Eval-mode sample = argmax(logits);
        # its log-prob is m - log_z.  Entropy reuses sum_e (exact divide).
        m = jnp.max(logits, axis=-1, keepdims=True)
        e = jnp.exp(logits - m)
        sum_e = jnp.sum(e, axis=-1, keepdims=True)
        log_z = m + jnp.log(sum_e)
        sel_logp = m - log_z
        ent = jnp.maximum(
            log_z - jnp.sum(e * logits, axis=-1, keepdims=True) / sum_e, 0.0)
        # argmax via iota/min idiom (first occurrence, matches torch.argmax).
        idx = jnp.min(jnp.where(logits == m, lane, KP), axis=-1, keepdims=True)

        # Pack [sample, selected-logp, entropy] into one lane-dense row.
        step_out[t, :, :] = jnp.where(
            lane == 0, idx.astype(jnp.float32),
            jnp.where(lane == 1, sel_logp,
                      jnp.where(lane == 2, ent, 0.0)))

        return (h_new, c_new)

    h, c = lax.fori_loop(0, num_steps, step, (h0_ref[...], c0_ref[...]),
                         unroll=unroll)
    h_out[...] = h
    c_out[...] = c


@functools.lru_cache(maxsize=None)
def _make_decoder(num_steps, BP, HP, KP):
    kernel = functools.partial(_controller_steps_kernel,
                               num_steps=num_steps,
                               unroll=bool(num_steps <= 4))   # unroll the short phase-1 loop
    fn = pl.pallas_call(
        kernel,
        out_shape=(
            jax.ShapeDtypeStruct((BP, HP), jnp.float32),            # h_final
            jax.ShapeDtypeStruct((BP, HP), jnp.float32),            # c_final
            jax.ShapeDtypeStruct((num_steps, BP, KP), jnp.float32),  # packed per-step results
        ),
        in_specs=[
            pl.BlockSpec(memory_space=pltpu.MemorySpace.SMEM),   # head-id schedule
            pl.BlockSpec(memory_space=pltpu.MemorySpace.VMEM),   # h0
            pl.BlockSpec(memory_space=pltpu.MemorySpace.VMEM),   # c0
            pl.BlockSpec(memory_space=pltpu.MemorySpace.VMEM),   # W_hh^T (resident)
            pl.BlockSpec(memory_space=pltpu.MemorySpace.VMEM),   # b_eff  (resident)
            pl.BlockSpec(memory_space=pltpu.MemorySpace.VMEM),   # head-W stack (resident)
            pl.BlockSpec(memory_space=pltpu.MemorySpace.VMEM),   # head-b stack (resident)
        ],
        out_specs=(
            pl.BlockSpec(memory_space=pltpu.MemorySpace.VMEM),
            pl.BlockSpec(memory_space=pltpu.MemorySpace.VMEM),
            pl.BlockSpec(memory_space=pltpu.MemorySpace.VMEM),
        ),
    )
    return jax.jit(fn)


class PallasENASController:
    """JAX/Pallas re-implementation of the ENASController forward pass (eval mode)."""

    def __init__(self, input_size=64, hidden_size=100, seed=0,
                 weight_dtype=jnp.bfloat16):
        self.input_size = input_size
        self.hidden_size = hidden_size

        self.network_type_options = ['cnn', 'mlp', 'enhanced_mlp', 'resnet', 'mobilenet']
        self.layer_count_options = [2, 3, 4, 5, 6, 8, 10]
        self.filter_options = [16, 32, 64, 128, 256, 512]
        self.kernel_options = [1, 3, 5, 7]
        self.hidden_unit_options = [64, 128, 256, 512, 1024, 2048]
        self.activation_options = ['relu', 'leaky_relu', 'elu', 'selu', 'gelu']

        # Padded kernel dims.  BP = 16 so bf16 MXU LHS is a native (16,128) tile.
        self.HP = _round_up(hidden_size, 128)
        self.KP = 128
        self.BP = 16

        key = jax.random.PRNGKey(seed)
        stdv = 1.0 / np.sqrt(hidden_size)

        def u(k, shape):
            return jax.random.uniform(k, shape, jnp.float32, -stdv, stdv)

        keys = jax.random.split(key, 17)

        # LSTM weights, PyTorch gate order (i, f, g, o), each gate a contiguous
        # HP-wide block.  The input weights are only needed to fold the constant
        # start-token contribution into one effective bias:
        #   b_eff = start_token @ W_ih^T + b_ih + b_hh   (start_token is zeros).
        whh = jnp.zeros((self.HP, 4 * self.HP), jnp.float32)
        b_eff = jnp.zeros((1, 4 * self.HP), jnp.float32)
        x0 = jnp.zeros((1, input_size), jnp.float32)          # start_token Parameter (zeros)
        for g in range(4):
            lo = g * self.HP
            wih_g = u(keys[g], (input_size, hidden_size))
            whh_g = u(keys[4 + g], (hidden_size, hidden_size))
            b_ih_g = u(keys[8 + g], (hidden_size,))
            b_hh_g = u(keys[12 + g], (hidden_size,))
            whh = whh.at[:hidden_size, lo:lo + hidden_size].set(whh_g)
            fold = (x0 @ wih_g)[0] + b_ih_g + b_hh_g
            b_eff = b_eff.at[0, lo:lo + hidden_size].set(fold)
        self.whh = whh.astype(weight_dtype)    # MXU operand only
        self.b_eff = b_eff                     # f32 (added post-matmul)

        # Decision heads stacked into (NH, HP, KP) / (NH, 1, KP); padded class
        # lanes are masked via bias = -1e9 (softmax prob exactly 0).
        head_dims = {
            'network_type': len(self.network_type_options),
            'layer_count': len(self.layer_count_options),
            'filter': len(self.filter_options),
            'kernel': len(self.kernel_options),
            'hidden_units': len(self.hidden_unit_options),
            'activation': len(self.activation_options),
            'skip': 2,
            'batch_norm': 2,
        }
        NH = len(_HEAD_ORDER)
        hkeys = jax.random.split(keys[16], 2 * NH)
        whead = jnp.zeros((NH, self.HP, self.KP), jnp.float32)
        bhead = jnp.full((NH, 1, self.KP), -1e9, jnp.float32)
        for n, name in enumerate(_HEAD_ORDER):
            K = head_dims[name]
            whead = whead.at[n, :hidden_size, :K].set(u(hkeys[2 * n], (hidden_size, K)))
            bhead = bhead.at[n, 0, :K].set(u(hkeys[2 * n + 1], (K,)))
        self.whead = whead.astype(weight_dtype)   # VMEM-resident stack (512 KiB f32 / 256 KiB bf16)
        self.bhead = bhead                        # f32

    # ------------------------------------------------------------------ #

    def _run_steps(self, schedule, h, c, bucket=False):
        """One fused multi-step decode (single pallas_call, in-kernel loop).
        Returns new (h, c) plus per-step (samples, selected log-prob, entropy),
        each shaped (len(schedule), BP)."""
        n = len(schedule)
        # Phase 2 is the last use of (h, c), so padded steps are harmless; bucket
        # the length to a power of two to cap the number of compiled variants.
        n_pad = max(8, int(pl.next_power_of_2(n))) if bucket else n
        hid = np.zeros((n_pad,), np.int32)
        hid[:n] = np.asarray(schedule, np.int32)
        fn = _make_decoder(n_pad, self.BP, self.HP, self.KP)
        h2, c2, packed = fn(jnp.asarray(hid), h, c, self.whh, self.b_eff,
                            self.whead, self.bhead)
        packed = np.asarray(packed)              # single host readback per phase
        samples = packed[:n, :, 0].astype(np.int32)
        logp = packed[:n, :, 1]
        ent = packed[:n, :, 2]
        return h2, c2, samples, logp, ent

    def forward(self, batch_size=1):
        assert batch_size <= self.BP, "raise BP for larger batches"
        h = jnp.zeros((self.BP, self.HP), jnp.float32)
        c = jnp.zeros_like(h)
        log_probs, entropies = [], []

        # ---- Phase 1: the three fixed decisions (exact length: h/c continues). ----
        sched1 = [_HEAD_INDEX['network_type'], _HEAD_INDEX['layer_count'],
                  _HEAD_INDEX['batch_norm']]
        h, c, samp1, lp1, en1 = self._run_steps(sched1, h, c, bucket=False)
        net_types, layer_counts, use_bn = samp1[0], samp1[1], samp1[2]
        for t in range(3):
            log_probs.append(jnp.asarray(lp1[t][:batch_size]))
            entropies.append(jnp.asarray(en1[t][:batch_size]))

        # ---- Host glue: build the remaining (data-dependent) decision plan in
        # exactly the reference module's order (one shared LSTM state advanced
        # sequentially through every batch element's plan), then run it in ONE
        # kernel call. ----
        plans, metas = [], []
        for i in range(batch_size):
            network_type = self.network_type_options[int(net_types[i])]
            num_layers = self.layer_count_options[int(layer_counts[i])]
            plan = []
            if network_type in _CNN_TYPES:
                for _ in range(num_layers):
                    plan += ['filter', 'kernel', 'activation']
                    if network_type in ('resnet', 'cnn'):
                        plan.append('skip')
            elif network_type in _MLP_TYPES:
                for _ in range(num_layers):
                    plan += ['hidden_units', 'activation']
                if network_type == 'enhanced_mlp':
                    plan += ['skip', 'skip']
            plans.append(plan)
            metas.append((network_type, num_layers))

        sched2 = [_HEAD_INDEX[name] for plan in plans for name in plan]
        samp2 = lp2 = en2 = None
        if sched2:
            h, c, samp2, lp2, en2 = self._run_steps(sched2, h, c, bucket=True)

        cursor = [0]

        def consume():
            t = cursor[0]
            cursor[0] += 1
            log_probs.append(jnp.asarray(lp2[t][:batch_size]))
            entropies.append(jnp.asarray(en2[t][:batch_size]))
            return samp2[t]

        architectures = []
        for i in range(batch_size):
            network_type, num_layers = metas[i]
            arch = {'network_type': network_type,
                    'num_layers': num_layers,
                    'use_batch_norm': bool(int(use_bn[i]))}
            if network_type in _CNN_TYPES:
                filters, kernel_sizes, activations, skips = [], [], [], []
                for _ in range(num_layers):
                    filters.append(self.filter_options[int(consume()[i])])
                    kernel_sizes.append(self.kernel_options[int(consume()[i])])
                    activations.append(self.activation_options[int(consume()[i])])
                    if network_type in ('resnet', 'cnn'):
                        skips.append(bool(int(consume()[i])))
                arch['filters'] = filters
                arch['kernel_sizes'] = kernel_sizes
                arch['activations'] = activations
                if network_type in ('resnet', 'cnn'):
                    arch['use_skip_connections'] = skips
            elif network_type in _MLP_TYPES:
                hidden_units, activations = [], []
                for _ in range(num_layers):
                    hidden_units.append(self.hidden_unit_options[int(consume()[i])])
                    activations.append(self.activation_options[int(consume()[i])])
                arch['hidden_units'] = hidden_units
                arch['activations'] = activations
                if network_type == 'enhanced_mlp':
                    arch['use_residual'] = bool(int(consume()[i]))
                    arch['use_layer_norm'] = bool(int(consume()[i]))
            architectures.append(arch)

        return architectures, log_probs, entropies


if __name__ == "__main__":
    ctrl = PallasENASController(input_size=64, hidden_size=100, seed=0)
    archs, log_probs, entropies = ctrl.forward(batch_size=2)

    lp_stack = jax.block_until_ready(jnp.stack(log_probs))
    en_stack = jax.block_until_ready(jnp.stack(entropies))

    assert len(archs) == 2
    for a in archs:
        assert a['network_type'] in ctrl.network_type_options
        assert a['num_layers'] in ctrl.layer_count_options
    assert lp_stack.shape[1] == 2 and en_stack.shape[1] == 2
    assert bool(jnp.all(jnp.isfinite(lp_stack)))
    assert bool(jnp.all(jnp.isfinite(en_stack)))
    assert bool(jnp.all(lp_stack <= 0.0))
    assert bool(jnp.all(en_stack >= 0.0))
    print("KERNEL_OK")
</pallas_src>

<mosaic_0001>
module attributes {stable_mosaic.version = 11 : i64} {
  func.func @_controller_steps_kernel(%arg0: memref<3xi32, #tpu.memory_space<smem>>, %arg1: memref<16x128xf32, #tpu.memory_space<vmem>>, %arg2: memref<16x128xf32, #tpu.memory_space<vmem>>, %arg3: memref<128x512xbf16, #tpu.memory_space<vmem>>, %arg4: memref<1x512xf32, #tpu.memory_space<vmem>>, %arg5: memref<8x128x128xbf16, #tpu.memory_space<vmem>>, %arg6: memref<8x1x128xf32, #tpu.memory_space<vmem>>, %arg7: memref<16x128xf32, #tpu.memory_space<vmem>>, %arg8: memref<16x128xf32, #tpu.memory_space<vmem>>, %arg9: memref<3x16x128xf32, #tpu.memory_space<vmem>>) attributes {dimension_semantics = [], scalar_prefetch = 0 : i64, scratch_operands = 0 : i64, tpu.core_type = #tpu.core_type<tc>} {
    %c0 = arith.constant 0 : index
    %c0_0 = arith.constant 0 : index
    %0 = vector.load %arg4[%c0, %c0_0] : memref<1x512xf32, #tpu.memory_space<vmem>>, vector<1x512xf32>
    %1 = vector.shape_cast %0 : vector<1x512xf32> to vector<1x512xf32>
    %2 = vector.broadcast %1 : vector<1x512xf32> to vector<16x512xf32>
    %3 = tpu.iota {dimensions = array<i32: 1>} : vector<16x128xi32>
    %c0_1 = arith.constant 0 : index
    %c0_2 = arith.constant 0 : index
    %4 = vector.load %arg1[%c0_1, %c0_2] : memref<16x128xf32, #tpu.memory_space<vmem>>, vector<16x128xf32>
    %c0_3 = arith.constant 0 : index
    %c0_4 = arith.constant 0 : index
    %5 = vector.load %arg2[%c0_3, %c0_4] : memref<16x128xf32, #tpu.memory_space<vmem>>, vector<16x128xf32>
    %c0_i32 = arith.constant 0 : i32
    %6 = arith.truncf %4 : vector<16x128xf32> to vector<16x128xbf16>
    %c0_5 = arith.constant 0 : index
    %c0_6 = arith.constant 0 : index
    %7 = vector.load %arg3[%c0_5, %c0_6] : memref<128x512xbf16, #tpu.memory_space<vmem>>, vector<128x512xbf16>
    %cst = arith.constant dense<0.000000e+00> : vector<16x512xf32>
    %8 = tpu.matmul %6, %7, %cst {dimension_numbers = #tpu.dot_dimension_numbers<[1], [0], [0], [1], [0, 0, 1, 1], [], []>} : vector<16x128xbf16>, vector<128x512xbf16>, vector<16x512xf32> -> vector<16x512xf32>
    %9 = arith.addf %8, %2 : vector<16x512xf32>
    %10 = vector.extract_strided_slice %9 {offsets = [0, 0], sizes = [16, 128], strides = [1, 1]} : vector<16x512xf32> to vector<16x128xf32>
    %11 = arith.negf %10 : vector<16x128xf32>
    %12 = math.exp %11 : vector<16x128xf32>
    %cst_7 = arith.constant 1.000000e+00 : f32
    %13 = vector.broadcast %cst_7 : f32 to vector<16x128xf32>
    %14 = arith.addf %13, %12 : vector<16x128xf32>
    %15 = arith.divf %13, %14 : vector<16x128xf32>
    %16 = vector.extract_strided_slice %9 {offsets = [0, 128], sizes = [16, 128], strides = [1, 1]} : vector<16x512xf32> to vector<16x128xf32>
    %17 = arith.negf %16 : vector<16x128xf32>
    %18 = math.exp %17 : vector<16x128xf32>
    %cst_8 = arith.constant 1.000000e+00 : f32
    %19 = vector.broadcast %cst_8 : f32 to vector<16x128xf32>
    %20 = arith.addf %19, %18 : vector<16x128xf32>
    %21 = arith.divf %19, %20 : vector<16x128xf32>
    %22 = vector.extract_strided_slice %9 {offsets = [0, 256], sizes = [16, 128], strides = [1, 1]} : vector<16x512xf32> to vector<16x128xf32>
    %23 = math.tanh %22 : vector<16x128xf32>
    %24 = vector.extract_strided_slice %9 {offsets = [0, 384], sizes = [16, 128], strides = [1, 1]} : vector<16x512xf32> to vector<16x128xf32>
    %25 = arith.negf %24 : vector<16x128xf32>
    %26 = math.exp %25 : vector<16x128xf32>
    %cst_9 = arith.constant 1.000000e+00 : f32
    %27 = vector.broadcast %cst_9 : f32 to vector<16x128xf32>
    %28 = arith.addf %27, %26 : vector<16x128xf32>
    %29 = arith.divf %27, %28 : vector<16x128xf32>
    %30 = arith.mulf %21, %5 : vector<16x128xf32>
    %31 = arith.mulf %15, %23 : vector<16x128xf32>
    %32 = arith.addf %30, %31 : vector<16x128xf32>
    %33 = math.tanh %32 : vector<16x128xf32>
    %34 = arith.mulf %29, %33 : vector<16x128xf32>
    %35 = arith.index_cast %c0_i32 : i32 to index
    %36 = memref.load %arg0[%35] : memref<3xi32, #tpu.memory_space<smem>>
    %37 = arith.index_cast %36 : i32 to index
    %c0_10 = arith.constant 0 : index
    %c0_11 = arith.constant 0 : index
    %38 = vector.load %arg5[%37, %c0_10, %c0_11] : memref<8x128x128xbf16, #tpu.memory_space<vmem>>, vector<1x128x128xbf16>
    %39 = vector.shape_cast %38 : vector<1x128x128xbf16> to vector<128x128xbf16>
    %40 = arith.index_cast %36 : i32 to index
    %c0_12 = arith.constant 0 : index
    %c0_13 = arith.constant 0 : index
    %41 = vector.load %arg6[%40, %c0_12, %c0_13] : memref<8x1x128xf32, #tpu.memory_space<vmem>>, vector<1x1x128xf32>
    %42 = vector.shape_cast %41 : vector<1x1x128xf32> to vector<1x128xf32>
    %43 = arith.truncf %34 : vector<16x128xf32> to vector<16x128xbf16>
    %cst_14 = arith.constant dense<0.000000e+00> : vector<16x128xf32>
    %44 = tpu.matmul %43, %39, %cst_14 {dimension_numbers = #tpu.dot_dimension_numbers<[1], [0], [0], [1], [0, 0, 1, 1], [], []>} : vector<16x128xbf16>, vector<128x128xbf16>, vector<16x128xf32> -> vector<16x128xf32>
    %45 = vector.broadcast %42 : vector<1x128xf32> to vector<16x128xf32>
    %46 = arith.addf %44, %45 : vector<16x128xf32>
    %cst_15 = arith.constant dense<0xFF800000> : vector<16xf32>
    %47 = vector.multi_reduction <maximumf>, %46, %cst_15 [1] : vector<16x128xf32> to vector<16xf32>
    %48 = vector.shape_cast %47 : vector<16xf32> to vector<16x1xf32>
    %49 = vector.broadcast %48 : vector<16x1xf32> to vector<16x128xf32>
    %50 = arith.subf %46, %49 : vector<16x128xf32>
    %51 = math.exp %50 : vector<16x128xf32>
    %cst_16 = arith.constant dense<0.000000e+00> : vector<16xf32>
    %52 = vector.multi_reduction <add>, %51, %cst_16 [1] : vector<16x128xf32> to vector<16xf32>
    %53 = vector.shape_cast %52 : vector<16xf32> to vector<16x1xf32>
    %54 = math.log %53 : vector<16x1xf32>
    %55 = arith.addf %48, %54 : vector<16x1xf32>
    %56 = arith.subf %48, %55 : vector<16x1xf32>
    %57 = arith.mulf %51, %46 : vector<16x128xf32>
    %cst_17 = arith.constant dense<0.000000e+00> : vector<16xf32>
    %58 = vector.multi_reduction <add>, %57, %cst_17 [1] : vector<16x128xf32> to vector<16xf32>
    %59 = vector.shape_cast %58 : vector<16xf32> to vector<16x1xf32>
    %60 = arith.divf %59, %53 : vector<16x1xf32>
    %61 = arith.subf %55, %60 : vector<16x1xf32>
    %cst_18 = arith.constant 0.000000e+00 : f32
    %62 = vector.broadcast %cst_18 : f32 to vector<16x1xf32>
    %63 = arith.maximumf %61, %62 : vector<16x1xf32>
    %64 = vector.broadcast %48 : vector<16x1xf32> to vector<16x128xf32>
    %65 = arith.cmpf oeq, %46, %64 : vector<16x128xf32>
    %c128_i32 = arith.constant 128 : i32
    %66 = vector.broadcast %c128_i32 : i32 to vector<16x128xi32>
    %67 = arith.select %65, %3, %66 : vector<16x128xi1>, vector<16x128xi32>
    %cst_19 = arith.constant dense<2147483647> : vector<16xi32>
    %68 = vector.multi_reduction <minsi>, %67, %cst_19 [1] : vector<16x128xi32> to vector<16xi32>
    %69 = vector.shape_cast %68 : vector<16xi32> to vector<16x1xi32>
    %c0_i32_20 = arith.constant 0 : i32
    %70 = vector.broadcast %c0_i32_20 : i32 to vector<16x128xi32>
    %71 = arith.cmpi eq, %3, %70 : vector<16x128xi32>
    %72 = arith.sitofp %69 : vector<16x1xi32> to vector<16x1xf32>
    %c1_i32 = arith.constant 1 : i32
    %73 = vector.broadcast %c1_i32 : i32 to vector<16x128xi32>
    %74 = arith.cmpi eq, %3, %73 : vector<16x128xi32>
    %c2_i32 = arith.constant 2 : i32
    %75 = vector.broadcast %c2_i32 : i32 to vector<16x128xi32>
    %76 = arith.cmpi eq, %3, %75 : vector<16x128xi32>
    %cst_21 = arith.constant 0.000000e+00 : f32
    %77 = vector.shape_cast %63 : vector<16x1xf32> to vector<16x1xf32>
    %78 = vector.broadcast %77 : vector<16x1xf32> to vector<16x128xf32>
    %79 = vector.broadcast %cst_21 : f32 to vector<16x128xf32>
    %80 = arith.select %76, %78, %79 : vector<16x128xi1>, vector<16x128xf32>
    %81 = vector.shape_cast %56 : vector<16x1xf32> to vector<16x1xf32>
    %82 = vector.broadcast %81 : vector<16x1xf32> to vector<16x128xf32>
    %83 = arith.select %74, %82, %80 : vector<16x128xi1>, vector<16x128xf32>
    %84 = vector.shape_cast %72 : vector<16x1xf32> to vector<16x1xf32>
    %85 = vector.broadcast %84 : vector<16x1xf32> to vector<16x128xf32>
    %86 = arith.select %71, %85, %83 : vector<16x128xi1>, vector<16x128xf32>
    %87 = arith.index_cast %c0_i32 : i32 to index
    %c0_22 = arith.constant 0 : index
    %c0_23 = arith.constant 0 : index
    %88 = vector.load %arg9[%87, %c0_22, %c0_23] : memref<3x16x128xf32, #tpu.memory_space<vmem>>, vector<1x16x128xf32>
    %89 = vector.shape_cast %88 : vector<1x16x128xf32> to vector<16x128xf32>
    %90 = vector.shape_cast %86 : vector<16x128xf32> to vector<1x16x128xf32>
    tpu.vector_store %arg9[%87, %c0_22, %c0_23], %90 {strides = array<i32>} : memref<3x16x128xf32, #tpu.memory_space<vmem>>, vector<1x16x128xf32>,
    %c1_i32_24 = arith.constant 1 : i32
    %91 = arith.truncf %34 : vector<16x128xf32> to vector<16x128xbf16>
    %c0_25 = arith.constant 0 : index
    %c0_26 = arith.constant 0 : index
    %92 = vector.load %arg3[%c0_25, %c0_26] : memref<128x512xbf16, #tpu.memory_space<vmem>>, vector<128x512xbf16>
    %cst_27 = arith.constant dense<0.000000e+00> : vector<16x512xf32>
    %93 = tpu.matmul %91, %92, %cst_27 {dimension_numbers = #tpu.dot_dimension_numbers<[1], [0], [0], [1], [0, 0, 1, 1], [], []>} : vector<16x128xbf16>, vector<128x512xbf16>, vector<16x512xf32> -> vector<16x512xf32>
    %94 = arith.addf %93, %2 : vector<16x512xf32>
    %95 = vector.extract_strided_slice %94 {offsets = [0, 0], sizes = [16, 128], strides = [1, 1]} : vector<16x512xf32> to vector<16x128xf32>
    %96 = arith.negf %95 : vector<16x128xf32>
    %97 = math.exp %96 : vector<16x128xf32>
    %cst_28 = arith.constant 1.000000e+00 : f32
    %98 = vector.broadcast %cst_28 : f32 to vector<16x128xf32>
    %99 = arith.addf %98, %97 : vector<16x128xf32>
    %100 = arith.divf %98, %99 : vector<16x128xf32>
    %101 = vector.extract_strided_slice %94 {offsets = [0, 128], sizes = [16, 128], strides = [1, 1]} : vector<16x512xf32> to vector<16x128xf32>
    %102 = arith.negf %101 : vector<16x128xf32>
    %103 = math.exp %102 : vector<16x128xf32>
    %cst_29 = arith.constant 1.000000e+00 : f32
    %104 = vector.broadcast %cst_29 : f32 to vector<16x128xf32>
    %105 = arith.addf %104, %103 : vector<16x128xf32>
    %106 = arith.divf %104, %105 : vector<16x128xf32>
    %107 = vector.extract_strided_slice %94 {offsets = [0, 256], sizes = [16, 128], strides = [1, 1]} : vector<16x512xf32> to vector<16x128xf32>
    %108 = math.tanh %107 : vector<16x128xf32>
    %109 = vector.extract_strided_slice %94 {offsets = [0, 384], sizes = [16, 128], strides = [1, 1]} : vector<16x512xf32> to vector<16x128xf32>
    %110 = arith.negf %109 : vector<16x128xf32>
    %111 = math.exp %110 : vector<16x128xf32>
    %cst_30 = arith.constant 1.000000e+00 : f32
    %112 = vector.broadcast %cst_30 : f32 to vector<16x128xf32>
    %113 = arith.addf %112, %111 : vector<16x128xf32>
    %114 = arith.divf %112, %113 : vector<16x128xf32>
    %115 = arith.mulf %106, %32 : vector<16x128xf32>
    %116 = arith.mulf %100, %108 : vector<16x128xf32>
    %117 = arith.addf %115, %116 : vector<16x128xf32>
    %118 = math.tanh %117 : vector<16x128xf32>
    %119 = arith.mulf %114, %118 : vector<16x128xf32>
    %120 = arith.index_cast %c1_i32_24 : i32 to index
    %121 = memref.load %arg0[%120] : memref<3xi32, #tpu.memory_space<smem>>
    %122 = arith.index_cast %121 : i32 to index
    %c0_31 = arith.constant 0 : index
    %c0_32 = arith.constant 0 : index
    %123 = vector.load %arg5[%122, %c0_31, %c0_32] : memref<8x128x128xbf16, #tpu.memory_space<vmem>>, vector<1x128x128xbf16>
    %124 = vector.shape_cast %123 : vector<1x128x128xbf16> to vector<128x128xbf16>
    %125 = arith.index_cast %121 : i32 to index
    %c0_33 = arith.constant 0 : index
    %c0_34 = arith.constant 0 : index
    %126 = vector.load %arg6[%125, %c0_33, %c0_34] : memref<8x1x128xf32, #tpu.memory_space<vmem>>, vector<1x1x128xf32>
    %127 = vector.shape_cast %126 : vector<1x1x128xf32> to vector<1x128xf32>
    %128 = arith.truncf %119 : vector<16x128xf32> to vector<16x128xbf16>
    %cst_35 = arith.constant dense<0.000000e+00> : vector<16x128xf32>
    %129 = tpu.matmul %128, %124, %cst_35 {dimension_numbers = #tpu.dot_dimension_numbers<[1], [0], [0], [1], [0, 0, 1, 1], [], []>} : vector<16x128xbf16>, vector<128x128xbf16>, vector<16x128xf32> -> vector<16x128xf32>
    %130 = vector.broadcast %127 : vector<1x128xf32> to vector<16x128xf32>
    %131 = arith.addf %129, %130 : vector<16x128xf32>
    %cst_36 = arith.constant dense<0xFF800000> : vector<16xf32>
    %132 = vector.multi_reduction <maximumf>, %131, %cst_36 [1] : vector<16x128xf32> to vector<16xf32>
    %133 = vector.shape_cast %132 : vector<16xf32> to vector<16x1xf32>
    %134 = vector.broadcast %133 : vector<16x1xf32> to vector<16x128xf32>
    %135 = arith.subf %131, %134 : vector<16x128xf32>
    %136 = math.exp %135 : vector<16x128xf32>
    %cst_37 = arith.constant dense<0.000000e+00> : vector<16xf32>
    %137 = vector.multi_reduction <add>, %136, %cst_37 [1] : vector<16x128xf32> to vector<16xf32>
    %138 = vector.shape_cast %137 : vector<16xf32> to vector<16x1xf32>
    %139 = math.log %138 : vector<16x1xf32>
    %140 = arith.addf %133, %139 : vector<16x1xf32>
    %141 = arith.subf %133, %140 : vector<16x1xf32>
    %142 = arith.mulf %136, %131 : vector<16x128xf32>
    %cst_38 = arith.constant dense<0.000000e+00> : vector<16xf32>
    %143 = vector.multi_reduction <add>, %142, %cst_38 [1] : vector<16x128xf32> to vector<16xf32>
    %144 = vector.shape_cast %143 : vector<16xf32> to vector<16x1xf32>
    %145 = arith.divf %144, %138 : vector<16x1xf32>
    %146 = arith.subf %140, %145 : vector<16x1xf32>
    %cst_39 = arith.constant 0.000000e+00 : f32
    %147 = vector.broadcast %cst_39 : f32 to vector<16x1xf32>
    %148 = arith.maximumf %146, %147 : vector<16x1xf32>
    %149 = vector.broadcast %133 : vector<16x1xf32> to vector<16x128xf32>
    %150 = arith.cmpf oeq, %131, %149 : vector<16x128xf32>
    %c128_i32_40 = arith.constant 128 : i32
    %151 = vector.broadcast %c128_i32_40 : i32 to vector<16x128xi32>
    %152 = arith.select %150, %3, %151 : vector<16x128xi1>, vector<16x128xi32>
    %cst_41 = arith.constant dense<2147483647> : vector<16xi32>
    %153 = vector.multi_reduction <minsi>, %152, %cst_41 [1] : vector<16x128xi32> to vector<16xi32>
    %154 = vector.shape_cast %153 : vector<16xi32> to vector<16x1xi32>
    %c0_i32_42 = arith.constant 0 : i32
    %155 = vector.broadcast %c0_i32_42 : i32 to vector<16x128xi32>
    %156 = arith.cmpi eq, %3, %155 : vector<16x128xi32>
    %157 = arith.sitofp %154 : vector<16x1xi32> to vector<16x1xf32>
    %c1_i32_43 = arith.constant 1 : i32
    %158 = vector.broadcast %c1_i32_43 : i32 to vector<16x128xi32>
    %159 = arith.cmpi eq, %3, %158 : vector<16x128xi32>
    %c2_i32_44 = arith.constant 2 : i32
    %160 = vector.broadcast %c2_i32_44 : i32 to vector<16x128xi32>
    %161 = arith.cmpi eq, %3, %160 : vector<16x128xi32>
    %cst_45 = arith.constant 0.000000e+00 : f32
    %162 = vector.shape_cast %148 : vector<16x1xf32> to vector<16x1xf32>
    %163 = vector.broadcast %162 : vector<16x1xf32> to vector<16x128xf32>
    %164 = vector.broadcast %cst_45 : f32 to vector<16x128xf32>
    %165 = arith.select %161, %163, %164 : vector<16x128xi1>, vector<16x128xf32>
    %166 = vector.shape_cast %141 : vector<16x1xf32> to vector<16x1xf32>
    %167 = vector.broadcast %166 : vector<16x1xf32> to vector<16x128xf32>
    %168 = arith.select %159, %167, %165 : vector<16x128xi1>, vector<16x128xf32>
    %169 = vector.shape_cast %157 : vector<16x1xf32> to vector<16x1xf32>
    %170 = vector.broadcast %169 : vector<16x1xf32> to vector<16x128xf32>
    %171 = arith.select %156, %170, %168 : vector<16x128xi1>, vector<16x128xf32>
    %172 = arith.index_cast %c1_i32_24 : i32 to index
    %c0_46 = arith.constant 0 : index
    %c0_47 = arith.constant 0 : index
    %173 = vector.load %arg9[%172, %c0_46, %c0_47] : memref<3x16x128xf32, #tpu.memory_space<vmem>>, vector<1x16x128xf32>
    %174 = vector.shape_cast %173 : vector<1x16x128xf32> to vector<16x128xf32>
    %175 = vector.shape_cast %171 : vector<16x128xf32> to vector<1x16x128xf32>
    tpu.vector_store %arg9[%172, %c0_46, %c0_47], %175 {strides = array<i32>} : memref<3x16x128xf32, #tpu.memory_space<vmem>>, vector<1x16x128xf32>,
    %c2_i32_48 = arith.constant 2 : i32
    %176 = arith.truncf %119 : vector<16x128xf32> to vector<16x128xbf16>
    %c0_49 = arith.constant 0 : index
    %c0_50 = arith.constant 0 : index
    %177 = vector.load %arg3[%c0_49, %c0_50] : memref<128x512xbf16, #tpu.memory_space<vmem>>, vector<128x512xbf16>
    %cst_51 = arith.constant dense<0.000000e+00> : vector<16x512xf32>
    %178 = tpu.matmul %176, %177, %cst_51 {dimension_numbers = #tpu.dot_dimension_numbers<[1], [0], [0], [1], [0, 0, 1, 1], [], []>} : vector<16x128xbf16>, vector<128x512xbf16>, vector<16x512xf32> -> vector<16x512xf32>
    %179 = arith.addf %178, %2 : vector<16x512xf32>
    %180 = vector.extract_strided_slice %179 {offsets = [0, 0], sizes = [16, 128], strides = [1, 1]} : vector<16x512xf32> to vector<16x128xf32>
    %181 = arith.negf %180 : vector<16x128xf32>
    %182 = math.exp %181 : vector<16x128xf32>
    %cst_52 = arith.constant 1.000000e+00 : f32
    %183 = vector.broadcast %cst_52 : f32 to vector<16x128xf32>
    %184 = arith.addf %183, %182 : vector<16x128xf32>
    %185 = arith.divf %183, %184 : vector<16x128xf32>
    %186 = vector.extract_strided_slice %179 {offsets = [0, 128], sizes = [16, 128], strides = [1, 1]} : vector<16x512xf32> to vector<16x128xf32>
    %187 = arith.negf %186 : vector<16x128xf32>
    %188 = math.exp %187 : vector<16x128xf32>
    %cst_53 = arith.constant 1.000000e+00 : f32
    %189 = vector.broadcast %cst_53 : f32 to vector<16x128xf32>
    %190 = arith.addf %189, %188 : vector<16x128xf32>
    %191 = arith.divf %189, %190 : vector<16x128xf32>
    %192 = vector.extract_strided_slice %179 {offsets = [0, 256], sizes = [16, 128], strides = [1, 1]} : vector<16x512xf32> to vector<16x128xf32>
    %193 = math.tanh %192 : vector<16x128xf32>
    %194 = vector.extract_strided_slice %179 {offsets = [0, 384], sizes = [16, 128], strides = [1, 1]} : vector<16x512xf32> to vector<16x128xf32>
    %195 = arith.negf %194 : vector<16x128xf32>
    %196 = math.exp %195 : vector<16x128xf32>
    %cst_54 = arith.constant 1.000000e+00 : f32
    %197 = vector.broadcast %cst_54 : f32 to vector<16x128xf32>
    %198 = arith.addf %197, %196 : vector<16x128xf32>
    %199 = arith.divf %197, %198 : vector<16x128xf32>
    %200 = arith.mulf %191, %117 : vector<16x128xf32>
    %201 = arith.mulf %185, %193 : vector<16x128xf32>
    %202 = arith.addf %200, %201 : vector<16x128xf32>
    %203 = math.tanh %202 : vector<16x128xf32>
    %204 = arith.mulf %199, %203 : vector<16x128xf32>
    %205 = arith.index_cast %c2_i32_48 : i32 to index
    %206 = memref.load %arg0[%205] : memref<3xi32, #tpu.memory_space<smem>>
    %207 = arith.index_cast %206 : i32 to index
    %c0_55 = arith.constant 0 : index
    %c0_56 = arith.constant 0 : index
    %208 = vector.load %arg5[%207, %c0_55, %c0_56] : memref<8x128x128xbf16, #tpu.memory_space<vmem>>, vector<1x128x128xbf16>
    %209 = vector.shape_cast %208 : vector<1x128x128xbf16> to vector<128x128xbf16>
    %210 = arith.index_cast %206 : i32 to index
    %c0_57 = arith.constant 0 : index
    %c0_58 = arith.constant 0 : index
    %211 = vector.load %arg6[%210, %c0_57, %c0_58] : memref<8x1x128xf32, #tpu.memory_space<vmem>>, vector<1x1x128xf32>
    %212 = vector.shape_cast %211 : vector<1x1x128xf32> to vector<1x128xf32>
    %213 = arith.truncf %204 : vector<16x128xf32> to vector<16x128xbf16>
    %cst_59 = arith.constant dense<0.000000e+00> : vector<16x128xf32>
    %214 = tpu.matmul %213, %209, %cst_59 {dimension_numbers = #tpu.dot_dimension_numbers<[1], [0], [0], [1], [0, 0, 1, 1], [], []>} : vector<16x128xbf16>, vector<128x128xbf16>, vector<16x128xf32> -> vector<16x128xf32>
    %215 = vector.broadcast %212 : vector<1x128xf32> to vector<16x128xf32>
    %216 = arith.addf %214, %215 : vector<16x128xf32>
    %cst_60 = arith.constant dense<0xFF800000> : vector<16xf32>
    %217 = vector.multi_reduction <maximumf>, %216, %cst_60 [1] : vector<16x128xf32> to vector<16xf32>
    %218 = vector.shape_cast %217 : vector<16xf32> to vector<16x1xf32>
    %219 = vector.broadcast %218 : vector<16x1xf32> to vector<16x128xf32>
    %220 = arith.subf %216, %219 : vector<16x128xf32>
    %221 = math.exp %220 : vector<16x128xf32>
    %cst_61 = arith.constant dense<0.000000e+00> : vector<16xf32>
    %222 = vector.multi_reduction <add>, %221, %cst_61 [1] : vector<16x128xf32> to vector<16xf32>
    %223 = vector.shape_cast %222 : vector<16xf32> to vector<16x1xf32>
    %224 = math.log %223 : vector<16x1xf32>
    %225 = arith.addf %218, %224 : vector<16x1xf32>
    %226 = arith.subf %218, %225 : vector<16x1xf32>
    %227 = arith.mulf %221, %216 : vector<16x128xf32>
    %cst_62 = arith.constant dense<0.000000e+00> : vector<16xf32>
    %228 = vector.multi_reduction <add>, %227, %cst_62 [1] : vector<16x128xf32> to vector<16xf32>
    %229 = vector.shape_cast %228 : vector<16xf32> to vector<16x1xf32>
    %230 = arith.divf %229, %223 : vector<16x1xf32>
    %231 = arith.subf %225, %230 : vector<16x1xf32>
    %cst_63 = arith.constant 0.000000e+00 : f32
    %232 = vector.broadcast %cst_63 : f32 to vector<16x1xf32>
    %233 = arith.maximumf %231, %232 : vector<16x1xf32>
    %234 = vector.broadcast %218 : vector<16x1xf32> to vector<16x128xf32>
    %235 = arith.cmpf oeq, %216, %234 : vector<16x128xf32>
    %c128_i32_64 = arith.constant 128 : i32
    %236 = vector.broadcast %c128_i32_64 : i32 to vector<16x128xi32>
    %237 = arith.select %235, %3, %236 : vector<16x128xi1>, vector<16x128xi32>
    %cst_65 = arith.constant dense<2147483647> : vector<16xi32>
    %238 = vector.multi_reduction <minsi>, %237, %cst_65 [1] : vector<16x128xi32> to vector<16xi32>
    %239 = vector.shape_cast %238 : vector<16xi32> to vector<16x1xi32>
    %c0_i32_66 = arith.constant 0 : i32
    %240 = vector.broadcast %c0_i32_66 : i32 to vector<16x128xi32>
    %241 = arith.cmpi eq, %3, %240 : vector<16x128xi32>
    %242 = arith.sitofp %239 : vector<16x1xi32> to vector<16x1xf32>
    %c1_i32_67 = arith.constant 1 : i32
    %243 = vector.broadcast %c1_i32_67 : i32 to vector<16x128xi32>
    %244 = arith.cmpi eq, %3, %243 : vector<16x128xi32>
    %c2_i32_68 = arith.constant 2 : i32
    %245 = vector.broadcast %c2_i32_68 : i32 to vector<16x128xi32>
    %246 = arith.cmpi eq, %3, %245 : vector<16x128xi32>
    %cst_69 = arith.constant 0.000000e+00 : f32
    %247 = vector.shape_cast %233 : vector<16x1xf32> to vector<16x1xf32>
    %248 = vector.broadcast %247 : vector<16x1xf32> to vector<16x128xf32>
    %249 = vector.broadcast %cst_69 : f32 to vector<16x128xf32>
    %250 = arith.select %246, %248, %249 : vector<16x128xi1>, vector<16x128xf32>
    %251 = vector.shape_cast %226 : vector<16x1xf32> to vector<16x1xf32>
    %252 = vector.broadcast %251 : vector<16x1xf32> to vector<16x128xf32>
    %253 = arith.select %244, %252, %250 : vector<16x128xi1>, vector<16x128xf32>
    %254 = vector.shape_cast %242 : vector<16x1xf32> to vector<16x1xf32>
    %255 = vector.broadcast %254 : vector<16x1xf32> to vector<16x128xf32>
    %256 = arith.select %241, %255, %253 : vector<16x128xi1>, vector<16x128xf32>
    %257 = arith.index_cast %c2_i32_48 : i32 to index
    %c0_70 = arith.constant 0 : index
    %c0_71 = arith.constant 0 : index
    %258 = vector.load %arg9[%257, %c0_70, %c0_71] : memref<3x16x128xf32, #tpu.memory_space<vmem>>, vector<1x16x128xf32>
    %259 = vector.shape_cast %258 : vector<1x16x128xf32> to vector<16x128xf32>
    %260 = vector.shape_cast %256 : vector<16x128xf32> to vector<1x16x128xf32>
    tpu.vector_store %arg9[%257, %c0_70, %c0_71], %260 {strides = array<i32>} : memref<3x16x128xf32, #tpu.memory_space<vmem>>, vector<1x16x128xf32>,
    %c3_i32 = arith.constant 3 : i32
    %c0_72 = arith.constant 0 : index
    %c0_73 = arith.constant 0 : index
    %261 = vector.load %arg7[%c0_72, %c0_73] : memref<16x128xf32, #tpu.memory_space<vmem>>, vector<16x128xf32>
    tpu.vector_store %arg7[%c0_72, %c0_73], %204 {strides = array<i32>} : memref<16x128xf32, #tpu.memory_space<vmem>>, vector<16x128xf32>,
    %c0_74 = arith.constant 0 : index
    %c0_75 = arith.constant 0 : index
    %262 = vector.load %arg8[%c0_74, %c0_75] : memref<16x128xf32, #tpu.memory_space<vmem>>, vector<16x128xf32>
    tpu.vector_store %arg8[%c0_74, %c0_75], %202 {strides = array<i32>} : memref<16x128xf32, #tpu.memory_space<vmem>>, vector<16x128xf32>,
    return
  }
}

</mosaic_0001>

<llo_original>
// kernel: tpu_custom_call.1
$region0: #{tpu_custom_call.1}
  #allocation0 [shape = 'u32[]', space=smem, size = 0x4, offset = 0x4, fixed_abs, tag = 'smem constant byte address 0x4 - core index']
  #allocation1 [shape = 'u32[144,128]{1,0:T(1,128)}', space=vmem, size = 0x12000, scoped, tag = 'internal scratch']
  %s0 = inlined_call_operand.hbm [shape: s32[3], index: 0, kind: input, shape index: {}]
  %s1 = inlined_call_operand.hbm [shape: f32[16,128], index: 1, kind: input, shape index: {}]
  %s2 = inlined_call_operand.hbm [shape: f32[16,128], index: 2, kind: input, shape index: {}]
  %s3 = inlined_call_operand.hbm [shape: bf16[128,512], index: 3, kind: input, shape index: {}]
  %s4 = inlined_call_operand.hbm [shape: f32[1,512], index: 4, kind: input, shape index: {}]
  %s5 = inlined_call_operand.hbm [shape: bf16[8,128,128], index: 5, kind: input, shape index: {}]
  %s6 = inlined_call_operand.vmem [shape: f32[8,1,128], index: 6, kind: input, shape index: {}]
  %s7 = inlined_call_operand.hbm [shape: f32[16,128], index: 7, kind: output, shape index: {0}]
  %s8 = inlined_call_operand.hbm [shape: f32[16,128], index: 8, kind: output, shape index: {1}]
  %s9 = inlined_call_operand.hbm [shape: f32[3,16,128], index: 9, kind: output, shape index: {2}]
  %10 = xla_tuple %s7, %s8, %s9
  %s11 = sld [smem:[#allocation0]]
  $region78: #{tpu_custom_call.1} parent=0
    _
  %s13 = ssub.s32 1, %s11
  %s14 = scalar_select 0, %s13, %s11
  $region1: #{tpu_custom_call.1} parent=0
    #allocation2 [shape = 'u8[512]{0}', space=smem, size = 0x200, scoped, tag = 'input window, operand 0, single buffered']
    #allocation3 [shape = 's32[1]{0}', space=sflag, size = 0x4, scoped, tag = 'scoped memory for tpu_custom_call.1']
    #allocation4 [shape = 's32[1]{0}', space=sflag, size = 0x4, scoped, tag = 'scoped memory for tpu_custom_call.1']
    #allocation5 [shape = 's32[1]{0}', space=sflag, size = 0x4, scoped, tag = 'scoped memory for tpu_custom_call.1']
    #allocation6 [shape = 'u8[8192]{0}', space=vmem, size = 0x2000, scoped, tag = 'input window, operand 1, single buffered']
    #allocation7 [shape = 'u8[8192]{0}', space=vmem, size = 0x2000, scoped, tag = 'input window, operand 2, single buffered']
    #allocation8 [shape = 's32[1]{0}', space=sflag, size = 0x4, scoped, tag = 'scoped memory for tpu_custom_call.1']
    #allocation9 [shape = 'u8[131072]{0}', space=vmem, size = 0x20000, scoped, tag = 'input window, operand 3, single buffered']
    #allocation10 [shape = 'u8[2048]{0}', space=vmem, size = 0x800, scoped, tag = 'input window, operand 4, single buffered']
    #allocation11 [shape = 's32[1]{0}', space=sflag, size = 0x4, scoped, tag = 'scoped memory for tpu_custom_call.1']
    #allocation12 [shape = 'u8[262144]{0}', space=vmem, size = 0x40000, scoped, tag = 'input window, operand 5, single buffered']
    #allocation13 [shape = 'u8[8192]{0}', space=vmem, size = 0x2000, scoped, tag = 'output window, operand 0, single buffered']
    #allocation14 [shape = 'u8[8192]{0}', space=vmem, size = 0x2000, scoped, tag = 'output window, operand 1, single buffered']
    #allocation15 [shape = 's32[1]{0}', space=sflag, size = 0x4, scoped, tag = 'scoped memory for tpu_custom_call.1']
    #allocation16 [shape = 'u8[24576]{0}', space=vmem, size = 0x6000, scoped, tag = 'output window, operand 2, single buffered']
    %15 = vsyncpa [#allocation5], 0
    %16 = vsyncpa [#allocation3], 0
    %17 = vsyncpa [#allocation8], 0
    %18 = vsyncpa [#allocation11], 0
    %19 = vsyncpa [#allocation4], 0
    %20 = vsyncpa [#allocation15], 0
    // Predicated region
    $region2: #{tpu_custom_call.1} parent=1 // pred_check
      _
    $region3: #{tpu_custom_call.1} parent=1 // pred_check_branch
      %22 = sbr.rel (0) target = $region5
    $region4: #{tpu_custom_call.1} parent=1 // pred_region
      %s24 = ssub.s32 16, 16
      %25 = vsyncadd [#allocation5], %s24
      %28 = dma.hbm_to_smem %s0, 16, [#allocation2], [#allocation5]
    $region5: #{tpu_custom_call.1} parent=1 // pred_fallthru
      _
    // Predicated region
    $region6: #{tpu_custom_call.1} parent=1 // pred_check
      _
    $region7: #{tpu_custom_call.1} parent=1 // pred_check_branch
      %30 = sbr.rel (0) target = $region9
    $region8: #{tpu_custom_call.1} parent=1 // pred_region
      %s32 = ssub.s32 256, 256
      %33 = vsyncadd [#allocation3], %s32
      %s34 = sshll.u32 [#allocation6], 4
      %s35 = int_to_ptr.vmem [resolvable:$true] %s34
      %40 = dma.hbm_to_vmem [thread:$0]  %s1, 256, %s35, [#allocation3], 128, 128, 8
    $region9: #{tpu_custom_call.1} parent=1 // pred_fallthru
      _
    // Predicated region
    $region10: #{tpu_custom_call.1} parent=1 // pred_check
      _
    $region11: #{tpu_custom_call.1} parent=1 // pred_check_branch
      %42 = sbr.rel (0) target = $region13
    $region12: #{tpu_custom_call.1} parent=1 // pred_region
      %s44 = ssub.s32 256, 256
      %45 = vsyncadd [#allocation8], %s44
      %s46 = sshll.u32 [#allocation7], 4
      %s47 = int_to_ptr.vmem [resolvable:$true] %s46
      %52 = dma.hbm_to_vmem [thread:$0]  %s2, 256, %s47, [#allocation8], 128, 128, 8
    $region13: #{tpu_custom_call.1} parent=1 // pred_fallthru
      _
    // Predicated region
    $region14: #{tpu_custom_call.1} parent=1 // pred_check
      _
    $region15: #{tpu_custom_call.1} parent=1 // pred_check_branch
      %54 = sbr.rel (0) target = $region17
    $region16: #{tpu_custom_call.1} parent=1 // pred_region
      %s56 = ssub.s32 4096, 4096
      %57 = vsyncadd [#allocation8], %s56
      %s58 = sshll.u32 [#allocation9], 4
      %s59 = int_to_ptr.vmem [resolvable:$true] %s58
      %64 = dma.hbm_to_vmem [thread:$0]  %s3, 4096, %s59, [#allocation8], 256, 256, 16
    $region17: #{tpu_custom_call.1} parent=1 // pred_fallthru
      _
    // Predicated region
    $region18: #{tpu_custom_call.1} parent=1 // pred_check
      _
    $region19: #{tpu_custom_call.1} parent=1 // pred_check_branch
      %66 = sbr.rel (0) target = $region21
    $region20: #{tpu_custom_call.1} parent=1 // pred_region
      %s68 = ssub.s32 64, 64
      %69 = vsyncadd [#allocation11], %s68
      %s71 = sshll.u32 [#allocation10], 4
      %s72 = int_to_ptr.vmem [resolvable:$true] %s71
      %74 = dma.hbm_to_vmem [thread:$0]  %s4, 64, %s72, [#allocation11]
    $region21: #{tpu_custom_call.1} parent=1 // pred_fallthru
      _
    // Predicated region
    $region22: #{tpu_custom_call.1} parent=1 // pred_check
      _
    $region23: #{tpu_custom_call.1} parent=1 // pred_check_branch
      %76 = sbr.rel (0) target = $region25
    $region24: #{tpu_custom_call.1} parent=1 // pred_region
      %s78 = ssub.s32 8192, 8192
      %79 = vsyncadd [#allocation11], %s78
      %s80 = sshll.u32 [#allocation12], 4
      %s81 = int_to_ptr.vmem [resolvable:$true] %s80
      %86 = dma.hbm_to_vmem [thread:$0]  %s5, 8192, %s81, [#allocation11], 64, 64, 4
    $region25: #{tpu_custom_call.1} parent=1 // pred_fallthru
      _
    // Predicated region
    $region26: #{tpu_custom_call.1} parent=1 // pred_check
      _
    $region27: #{tpu_custom_call.1} parent=1 // pred_check_branch
      %88 = sbr.rel (0) target = $region29
    $region28: #{tpu_custom_call.1} parent=1 // pred_region
      _
    $region29: #{tpu_custom_call.1} parent=1 // pred_fallthru
      _
    // Predicated region
    $region30: #{tpu_custom_call.1} parent=1 // pred_check
      _
    $region31: #{tpu_custom_call.1} parent=1 // pred_check_branch
      %90 = sbr.rel (0) target = $region33
    $region32: #{tpu_custom_call.1} parent=1 // pred_region
      %91 = dma.done [#allocation5], 16
    $region33: #{tpu_custom_call.1} parent=1 // pred_fallthru
      _
    // Predicated region
    $region34: #{tpu_custom_call.1} parent=1 // pred_check
      _
    $region35: #{tpu_custom_call.1} parent=1 // pred_check_branch
      %93 = sbr.rel (0) target = $region37
    $region36: #{tpu_custom_call.1} parent=1 // pred_region
      %94 = dma.done [#allocation3], 256
    $region37: #{tpu_custom_call.1} parent=1 // pred_fallthru
      _
    // Predicated region
    $region38: #{tpu_custom_call.1} parent=1 // pred_check
      _
    $region39: #{tpu_custom_call.1} parent=1 // pred_check_branch
      %96 = sbr.rel (0) target = $region41
    $region40: #{tpu_custom_call.1} parent=1 // pred_region
      %97 = dma.done [#allocation8], 256
    $region41: #{tpu_custom_call.1} parent=1 // pred_fallthru
      _
    // Predicated region
    $region42: #{tpu_custom_call.1} parent=1 // pred_check
      _
    $region43: #{tpu_custom_call.1} parent=1 // pred_check_branch
      %99 = sbr.rel (0) target = $region45
    $region44: #{tpu_custom_call.1} parent=1 // pred_region
      %100 = dma.done [#allocation8], 4096
    $region45: #{tpu_custom_call.1} parent=1 // pred_fallthru
      _
    // Predicated region
    $region46: #{tpu_custom_call.1} parent=1 // pred_check
      _
    $region47: #{tpu_custom_call.1} parent=1 // pred_check_branch
      %102 = sbr.rel (0) target = $region49
    $region48: #{tpu_custom_call.1} parent=1 // pred_region
      %103 = dma.done [#allocation11], 64
    $region49: #{tpu_custom_call.1} parent=1 // pred_fallthru
      _
    // Predicated region
    $region50: #{tpu_custom_call.1} parent=1 // pred_check
      _
    $region51: #{tpu_custom_call.1} parent=1 // pred_check_branch
      %105 = sbr.rel (0) target = $region53
    $region52: #{tpu_custom_call.1} parent=1 // pred_region
      %106 = dma.done [#allocation11], 8192
    $region53: #{tpu_custom_call.1} parent=1 // pred_fallthru
      _
    %107 = sfence
    %v109 = vld [vmem:[#allocation10] sm:$0xf]
    %v111 = vlaneseq
    %v112 = vshrl.u32 %v111, 7
    %v113 = vsub.s32 0, %v112
    %v114 = vrot.slane %v109, %v113
    %v115 = vlaneseq
    %v116 = vshrl.u32 %v115, 7
    %v117 = vsub.s32 1, %v116
    %v118 = vrot.slane %v109, %v117
    %v119 = vlaneseq
    %v120 = vshrl.u32 %v119, 7
    %v121 = vsub.s32 2, %v120
    %v122 = vrot.slane %v109, %v121
    %v123 = vlaneseq
    %v124 = vshrl.u32 %v123, 7
    %v125 = vsub.s32 3, %v124
    %v126 = vrot.slane %v109, %v125
    %v131 = vlaneseq
    %v132 = vand.u32 %v131, 127
    %v133 = vld [vmem:[#allocation6] sm:$0xff]
    %v134 = vld [vmem:[#allocation6 + $0x8] sm:$0xff]
    %v135 = vld [vmem:[#allocation7] sm:$0xff]
    %v136 = vld [vmem:[#allocation7 + $0x8] sm:$0xff]
    %v137 = vpack.c.bf16 %v134, %v133
    %v138 = vld [vmem:[#allocation9] sm:$0xff]
    %v139 = vld [vmem:[#allocation9 + $0x8] sm:$0xff]
    %v140 = vld [vmem:[#allocation9 + $0x10] sm:$0xff]
    %v141 = vld [vmem:[#allocation9 + $0x18] sm:$0xff]
    %v142 = vld [vmem:[#allocation9 + $0x20] sm:$0xff]
    %v143 = vld [vmem:[#allocation9 + $0x28] sm:$0xff]
    %v144 = vld [vmem:[#allocation9 + $0x30] sm:$0xff]
    %v145 = vld [vmem:[#allocation9 + $0x38] sm:$0xff]
    %v146 = vld [vmem:[#allocation9 + $0x40] sm:$0xff]
    %v147 = vld [vmem:[#allocation9 + $0x48] sm:$0xff]
    %v148 = vld [vmem:[#allocation9 + $0x50] sm:$0xff]
    %v149 = vld [vmem:[#allocation9 + $0x58] sm:$0xff]
    %v150 = vld [vmem:[#allocation9 + $0x60] sm:$0xff]
    %v151 = vld [vmem:[#allocation9 + $0x68] sm:$0xff]
    %v152 = vld [vmem:[#allocation9 + $0x70] sm:$0xff]
    %v153 = vld [vmem:[#allocation9 + $0x78] sm:$0xff]
    %v154 = vld [vmem:[#allocation9 + $0x80] sm:$0xff]
    %v155 = vld [vmem:[#allocation9 + $0x88] sm:$0xff]
    %v156 = vld [vmem:[#allocation9 + $0x90] sm:$0xff]
    %v157 = vld [vmem:[#allocation9 + $0x98] sm:$0xff]
    %v158 = vld [vmem:[#allocation9 + $0xa0] sm:$0xff]
    %v159 = vld [vmem:[#allocation9 + $0xa8] sm:$0xff]
    %v160 = vld [vmem:[#allocation9 + $0xb0] sm:$0xff]
    %v161 = vld [vmem:[#allocation9 + $0xb8] sm:$0xff]
    %v162 = vld [vmem:[#allocation9 + $0xc0] sm:$0xff]
    %v163 = vld [vmem:[#allocation9 + $0xc8] sm:$0xff]
    %v164 = vld [vmem:[#allocation9 + $0xd0] sm:$0xff]
    %v165 = vld [vmem:[#allocation9 + $0xd8] sm:$0xff]
    %v166 = vld [vmem:[#allocation9 + $0xe0] sm:$0xff]
    %v167 = vld [vmem:[#allocation9 + $0xe8] sm:$0xff]
    %v168 = vld [vmem:[#allocation9 + $0xf0] sm:$0xff]
    %v169 = vld [vmem:[#allocation9 + $0xf8] sm:$0xff]
    %v202 = vunpack.c.l.b16 %v138
    %v203 = vunpack.c.h.b16 %v138
    %v204 = vunpack.c.l.b16 %v139
    %v205 = vunpack.c.h.b16 %v139
    %v206 = vunpack.c.l.b16 %v140
    %v207 = vunpack.c.h.b16 %v140
    %v208 = vunpack.c.l.b16 %v141
    %v209 = vunpack.c.h.b16 %v141
    %v210 = vunpack.c.l.b16 %v142
    %v211 = vunpack.c.h.b16 %v142
    %v212 = vunpack.c.l.b16 %v143
    %v213 = vunpack.c.h.b16 %v143
    %v214 = vunpack.c.l.b16 %v144
    %v215 = vunpack.c.h.b16 %v144
    %v216 = vunpack.c.l.b16 %v145
    %v217 = vunpack.c.h.b16 %v145
    %v218 = vunpack.c.l.b16 %v146
    %v219 = vunpack.c.h.b16 %v146
    %v220 = vunpack.c.l.b16 %v147
    %v221 = vunpack.c.h.b16 %v147
    %v222 = vunpack.c.l.b16 %v148
    %v223 = vunpack.c.h.b16 %v148
    %v224 = vunpack.c.l.b16 %v149
    %v225 = vunpack.c.h.b16 %v149
    %v226 = vunpack.c.l.b16 %v150
    %v227 = vunpack.c.h.b16 %v150
    %v228 = vunpack.c.l.b16 %v151
    %v229 = vunpack.c.h.b16 %v151
    %v230 = vunpack.c.l.b16 %v152
    %v231 = vunpack.c.h.b16 %v152
    %v232 = vunpack.c.l.b16 %v153
    %v233 = vunpack.c.h.b16 %v153
    %v234 = vunpack.c.l.b16 %v154
    %v235 = vunpack.c.h.b16 %v154
    %v236 = vunpack.c.l.b16 %v155
    %v237 = vunpack.c.h.b16 %v155
    %v238 = vunpack.c.l.b16 %v156
    %v239 = vunpack.c.h.b16 %v156
    %v240 = vunpack.c.l.b16 %v157
    %v241 = vunpack.c.h.b16 %v157
    %v242 = vunpack.c.l.b16 %v158
    %v243 = vunpack.c.h.b16 %v158
    %v244 = vunpack.c.l.b16 %v159
    %v245 = vunpack.c.h.b16 %v159
    %v246 = vunpack.c.l.b16 %v160
    %v247 = vunpack.c.h.b16 %v160
    %v248 = vunpack.c.l.b16 %v161
    %v249 = vunpack.c.h.b16 %v161
    %v250 = vunpack.c.l.b16 %v162
    %v251 = vunpack.c.h.b16 %v162
    %v252 = vunpack.c.l.b16 %v163
    %v253 = vunpack.c.h.b16 %v163
    %v254 = vunpack.c.l.b16 %v164
    %v255 = vunpack.c.h.b16 %v164
    %v256 = vunpack.c.l.b16 %v165
    %v257 = vunpack.c.h.b16 %v165
    %v258 = vunpack.c.l.b16 %v166
    %v259 = vunpack.c.h.b16 %v166
    %v260 = vunpack.c.l.b16 %v167
    %v261 = vunpack.c.h.b16 %v167
    %v262 = vunpack.c.l.b16 %v168
    %v263 = vunpack.c.h.b16 %v168
    %v264 = vunpack.c.l.b16 %v169
    %v265 = vunpack.c.h.b16 %v169
    %v266 = vpack.c.b16 %v206, %v202
    %v267 = vpack.c.b16 %v207, %v203
    %v268 = vpack.c.b16 %v208, %v204
    %v269 = vpack.c.b16 %v209, %v205
    %v270 = vpack.c.b16 %v214, %v210
    %v271 = vpack.c.b16 %v215, %v211
    %v272 = vpack.c.b16 %v216, %v212
    %v273 = vpack.c.b16 %v217, %v213
    %v274 = vpack.c.b16 %v222, %v218
    %v275 = vpack.c.b16 %v223, %v219
    %v276 = vpack.c.b16 %v224, %v220
    %v277 = vpack.c.b16 %v225, %v221
    %v278 = vpack.c.b16 %v230, %v226
    %v279 = vpack.c.b16 %v231, %v227
    %v280 = vpack.c.b16 %v232, %v228
    %v281 = vpack.c.b16 %v233, %v229
    %v282 = vpack.c.b16 %v238, %v234
    %v283 = vpack.c.b16 %v239, %v235
    %v284 = vpack.c.b16 %v240, %v236
    %v285 = vpack.c.b16 %v241, %v237
    %v286 = vpack.c.b16 %v246, %v242
    %v287 = vpack.c.b16 %v247, %v243
    %v288 = vpack.c.b16 %v248, %v244
    %v289 = vpack.c.b16 %v249, %v245
    %v290 = vpack.c.b16 %v254, %v250
    %v291 = vpack.c.b16 %v255, %v251
    %v292 = vpack.c.b16 %v256, %v252
    %v293 = vpack.c.b16 %v257, %v253
    %v294 = vpack.c.b16 %v262, %v258
    %v295 = vpack.c.b16 %v263, %v259
    %v296 = vpack.c.b16 %v264, %v260
    %v297 = vpack.c.b16 %v265, %v261
    %330 = vmatprep.subr.bf16.mxu0 %v295
    %331 = vmatpush1.bf16.msra.mxu0 %v294
    %332 = vmatprep.subr.bf16.mxu0 %v291
    %333 = vmatpush1.bf16.msra.mxu0 %v290
    %334 = vmatprep.subr.bf16.mxu0 %v287
    %335 = vmatpush1.bf16.msra.mxu0 %v286
    %336 = vmatprep.subr.bf16.mxu0 %v283
    %337 = vmatpush1.bf16.msra.mxu0 %v282
    %338 = vmatprep.subr.bf16.mxu0 %v279
    %339 = vmatpush1.bf16.msra.mxu0 %v278
    %340 = vmatprep.subr.bf16.mxu0 %v275
    %341 = vmatpush1.bf16.msra.mxu0 %v274
    %342 = vmatprep.subr.bf16.mxu0 %v271
    %343 = vmatpush1.bf16.msra.mxu0 %v270
    %344 = vmatprep.subr.bf16.mxu0 %v267
    %345 = vmatpush1.bf16.msra.mxu0 %v266
    %346 = vmatprep.subr.bf16.mxu0 0
    %347 = vmatpush2.bf16.msra.mxu0 0
    %348 = vmatprep.subr.bf16.mxu0 0
    %349 = vmatpush2.bf16.msra.mxu0 0
    %350 = vmatprep.subr.bf16.mxu0 0
    %351 = vmatpush2.bf16.msra.mxu0 0
    %352 = vmatprep.subr.bf16.mxu0 0
    %353 = vmatpush2.bf16.msra.mxu0 0
    %354 = vmatprep.subr.bf16.mxu0 0
    %355 = vmatpush2.bf16.msra.mxu0 0
    %356 = vmatprep.subr.bf16.mxu0 0
    %357 = vmatpush2.bf16.msra.mxu0 0
    %358 = vmatprep.subr.bf16.mxu0 0
    %359 = vmatpush2.bf16.msra.mxu0 0
    %360 = vmatprep.subr.bf16.mxu0 0
    %361 = vmatpush2.bf16.msra.mxu0 0
    %362 = vmatprep.mubr.bf16.mxu0 0
    %363 = vmatmul.mubr.bf16.gmra.mxu0 %v137
    %v364 = vpop.f32.mrf.mxu0
    %v365 = vadd.f32 %v114, %v364
    %v366 = vpop.f32.mrf.mxu0
    %v367 = vadd.f32 %v118, %v366
    %v368 = vpop.f32.mrf.mxu0
    %v369 = vadd.f32 %v114, %v368
    %v370 = vpop.f32.mrf.mxu0
    %v371 = vadd.f32 %v118, %v370
    %372 = vdwg.mxu0
    %373 = vmatprep.subr.bf16.mxu0 %v297
    %374 = vmatpush1.bf16.msra.mxu0 %v296
    %375 = vmatprep.subr.bf16.mxu0 %v293
    %376 = vmatpush1.bf16.msra.mxu0 %v292
    %377 = vmatprep.subr.bf16.mxu0 %v289
    %378 = vmatpush1.bf16.msra.mxu0 %v288
    %379 = vmatprep.subr.bf16.mxu0 %v285
    %380 = vmatpush1.bf16.msra.mxu0 %v284
    %381 = vmatprep.subr.bf16.mxu0 %v281
    %382 = vmatpush1.bf16.msra.mxu0 %v280
    %383 = vmatprep.subr.bf16.mxu0 %v277
    %384 = vmatpush1.bf16.msra.mxu0 %v276
    %385 = vmatprep.subr.bf16.mxu0 %v273
    %386 = vmatpush1.bf16.msra.mxu0 %v272
    %387 = vmatprep.subr.bf16.mxu0 %v269
    %388 = vmatpush1.bf16.msra.mxu0 %v268
    %389 = vmatprep.subr.bf16.mxu0 0
    %390 = vmatpush2.bf16.msra.mxu0 0
    %391 = vmatprep.subr.bf16.mxu0 0
    %392 = vmatpush2.bf16.msra.mxu0 0
    %393 = vmatprep.subr.bf16.mxu0 0
    %394 = vmatpush2.bf16.msra.mxu0 0
    %395 = vmatprep.subr.bf16.mxu0 0
    %396 = vmatpush2.bf16.msra.mxu0 0
    %397 = vmatprep.subr.bf16.mxu0 0
    %398 = vmatpush2.bf16.msra.mxu0 0
    %399 = vmatprep.subr.bf16.mxu0 0
    %400 = vmatpush2.bf16.msra.mxu0 0
    %401 = vmatprep.subr.bf16.mxu0 0
    %402 = vmatpush2.bf16.msra.mxu0 0
    %403 = vmatprep.subr.bf16.mxu0 0
    %404 = vmatpush2.bf16.msra.mxu0 0
    %405 = vmatprep.mubr.bf16.mxu0 0
    %406 = vmatmul.mubr.bf16.gmra.mxu0 %v137
    %v407 = vpop.f32.mrf.mxu0
    %v408 = vadd.f32 %v122, %v407
    %v409 = vpop.f32.mrf.mxu0
    %v410 = vadd.f32 %v126, %v409
    %v411 = vpop.f32.mrf.mxu0
    %v412 = vadd.f32 %v122, %v411
    %v413 = vpop.f32.mrf.mxu0
    %v414 = vadd.f32 %v126, %v413
    %415 = vdwg.mxu0
    %v416 = vxor.u32 %v365, 2147483648
    %v417 = vxor.u32 %v369, 2147483648
    %v418 = vmul.f32 %v416, 1.442695
    %v419 = vpow.pop %v418
    %v420 = vmul.f32 %v417, 1.442695
    %v421 = vpow.pop %v420
    %v422 = vadd.f32 %v419, 1.0
    %v423 = vadd.f32 %v421, 1.0
    %v424 = vrcp.pop %v422
    %v425 = vmul.f32 1.0, %v424
    %v426 = vrcp.pop %v423
    %v427 = vmul.f32 1.0, %v426
    %v428 = vxor.u32 %v367, 2147483648
    %v429 = vxor.u32 %v371, 2147483648
    %v430 = vmul.f32 %v428, 1.442695
    %v431 = vpow.pop %v430
    %v432 = vmul.f32 %v429, 1.442695
    %v433 = vpow.pop %v432
    %v434 = vadd.f32 %v431, 1.0
    %v435 = vadd.f32 %v433, 1.0
    %v436 = vrcp.pop %v434
    %v437 = vmul.f32 1.0, %v436
    %v438 = vrcp.pop %v435
    %v439 = vmul.f32 1.0, %v438
    %v440 = vtanh.pop %v408
    %v441 = vtanh.pop %v412
    %v442 = vxor.u32 %v410, 2147483648
    %v443 = vxor.u32 %v414, 2147483648
    %v444 = vmul.f32 %v442, 1.442695
    %v445 = vpow.pop %v444
    %v446 = vmul.f32 %v443, 1.442695
    %v447 = vpow.pop %v446
    %v448 = vadd.f32 %v445, 1.0
    %v449 = vadd.f32 %v447, 1.0
    %v450 = vrcp.pop %v448
    %v451 = vmul.f32 1.0, %v450
    %v452 = vrcp.pop %v449
    %v453 = vmul.f32 1.0, %v452
    %v454 = vmul.f32 %v437, %v135
    %v455 = vmul.f32 %v439, %v136
    %v456 = vmul.f32 %v425, %v440
    %v457 = vmul.f32 %v427, %v441
    %v458 = vadd.f32 %v454, %v456
    %v459 = vadd.f32 %v455, %v457
    %v460 = vtanh.pop %v458
    %v461 = vtanh.pop %v459
    %v462 = vmul.f32 %v451, %v460
    %v463 = vmul.f32 %v453, %v461
    %s464 = sld [smem:[#allocation2]]
    %s465 = smul.u32 %s464, 16
    %s466 = smul.addr %s465, 4
    %s467 = scalar_lea.vmem [#allocation12], %s466
    %v468 = vld [vmem:[%s467] sm:$0xf]
    %v469 = vld [vmem:[%s467 + $0x4] sm:$0xf]
    %v470 = vld [vmem:[%s467 + $0x8] sm:$0xf]
    %v471 = vld [vmem:[%s467 + $0xc] sm:$0xf]
    %v472 = vld [vmem:[%s467 + $0x10] sm:$0xf]
    %v473 = vld [vmem:[%s467 + $0x14] sm:$0xf]
    %v474 = vld [vmem:[%s467 + $0x18] sm:$0xf]
    %v475 = vld [vmem:[%s467 + $0x1c] sm:$0xf]
    %v476 = vld [vmem:[%s467 + $0x20] sm:$0xf]
    %v477 = vld [vmem:[%s467 + $0x24] sm:$0xf]
    %v478 = vld [vmem:[%s467 + $0x28] sm:$0xf]
    %v479 = vld [vmem:[%s467 + $0x2c] sm:$0xf]
    %v480 = vld [vmem:[%s467 + $0x30] sm:$0xf]
    %v481 = vld [vmem:[%s467 + $0x34] sm:$0xf]
    %v482 = vld [vmem:[%s467 + $0x38] sm:$0xf]
    %v483 = vld [vmem:[%s467 + $0x3c] sm:$0xf]
    %s484 = scalar_lea.vmem %s6, %s464
    %v485 = vld [vmem:[%s484] sm:$0x1]
    %v486 = vpack.c.bf16 %v463, %v462
    %v488 = vlaneseq
    %v489 = vshrl.u32 %v488, 7
    %v490 = vsub.s32 0, %v489
    %v491 = vrot.slane %v485, %v490
    %v509 = vunpack.c.l.b16 %v468
    %v510 = vunpack.c.l.b16 %v469
    %v511 = vunpack.c.l.b16 %v470
    %v512 = vunpack.c.l.b16 %v471
    %v513 = vunpack.c.l.b16 %v472
    %v514 = vunpack.c.l.b16 %v473
    %v515 = vunpack.c.l.b16 %v474
    %v516 = vunpack.c.l.b16 %v475
    %v517 = vunpack.c.l.b16 %v476
    %v518 = vunpack.c.l.b16 %v477
    %v519 = vunpack.c.l.b16 %v478
    %v520 = vunpack.c.l.b16 %v479
    %v521 = vunpack.c.l.b16 %v480
    %v522 = vunpack.c.l.b16 %v481
    %v523 = vunpack.c.l.b16 %v482
    %v524 = vunpack.c.l.b16 %v483
    %v525 = vpack.c.b16 %v510, %v509
    %v526 = vpack.c.b16 %v512, %v511
    %v527 = vpack.c.b16 %v514, %v513
    %v528 = vpack.c.b16 %v516, %v515
    %v529 = vpack.c.b16 %v518, %v517
    %v530 = vpack.c.b16 %v520, %v519
    %v531 = vpack.c.b16 %v522, %v521
    %v532 = vpack.c.b16 %v524, %v523
    %541 = vmatprep.subr.bf16.mxu0 0
    %542 = vmatpush1.bf16.msra.mxu0 %v532
    %543 = vmatprep.subr.bf16.mxu0 0
    %544 = vmatpush1.bf16.msra.mxu0 %v531
    %545 = vmatprep.subr.bf16.mxu0 0
    %546 = vmatpush1.bf16.msra.mxu0 %v530
    %547 = vmatprep.subr.bf16.mxu0 0
    %548 = vmatpush1.bf16.msra.mxu0 %v529
    %549 = vmatprep.subr.bf16.mxu0 0
    %550 = vmatpush1.bf16.msra.mxu0 %v528
    %551 = vmatprep.subr.bf16.mxu0 0
    %552 = vmatpush1.bf16.msra.mxu0 %v527
    %553 = vmatprep.subr.bf16.mxu0 0
    %554 = vmatpush1.bf16.msra.mxu0 %v526
    %555 = vmatprep.subr.bf16.mxu0 0
    %556 = vmatpush1.bf16.msra.mxu0 %v525
    %557 = vmatprep.subr.bf16.mxu0 0
    %558 = vmatpush2.bf16.msra.mxu0 0
    %559 = vmatprep.subr.bf16.mxu0 0
    %560 = vmatpush2.bf16.msra.mxu0 0
    %561 = vmatprep.subr.bf16.mxu0 0
    %562 = vmatpush2.bf16.msra.mxu0 0
    %563 = vmatprep.subr.bf16.mxu0 0
    %564 = vmatpush2.bf16.msra.mxu0 0
    %565 = vmatprep.subr.bf16.mxu0 0
    %566 = vmatpush2.bf16.msra.mxu0 0
    %567 = vmatprep.subr.bf16.mxu0 0
    %568 = vmatpush2.bf16.msra.mxu0 0
    %569 = vmatprep.subr.bf16.mxu0 0
    %570 = vmatpush2.bf16.msra.mxu0 0
    %571 = vmatprep.subr.bf16.mxu0 0
    %572 = vmatpush2.bf16.msra.mxu0 0
    %573 = vmatprep.mubr.bf16.mxu0 0
    %574 = vmatmul.mubr.bf16.gmra.mxu0 %v486
    %v575 = vpop.f32.mrf.mxu0
    %v576 = vadd.f32 %v491, %v575
    %v577 = vpop.f32.mrf.mxu0
    %v578 = vpop.f32.mrf.mxu0
    %v579 = vadd.f32 %v491, %v578
    %v580 = vpop.f32.mrf.mxu0
    %581 = vdwg.mxu0
    %582 = vmax.xlane.f32.xlu0 %v576
    %v583 = vpop.xlane.xlu0 %582
    %584 = vmax.xlane.f32.xlu0 %v579
    %v585 = vpop.xlane.xlu0 %584
    %v586 = vsub.f32 %v576, %v583
    %v587 = vsub.f32 %v579, %v585
    %v588 = vmul.f32 %v586, 1.442695
    %v589 = vpow.pop %v588
    %v590 = vmul.f32 %v587, 1.442695
    %v591 = vpow.pop %v590
    %592 = vadd.xlane.f32.xlu0 %v589
    %v593 = vpop.xlane.xlu0 %592
    %594 = vadd.xlane.f32.xlu0 %v591
    %v595 = vpop.xlane.xlu0 %594
    %v596 = vlog2.pop %v593
    %v597 = vmul.f32 %v596, 0.6931472
    %v598 = vlog2.pop %v595
    %v599 = vmul.f32 %v598, 0.6931472
    %v600 = vadd.f32 %v583, %v597
    %v601 = vadd.f32 %v585, %v599
    %v602 = vsub.f32 %v583, %v600
    %v603 = vsub.f32 %v585, %v601
    %v604 = vmul.f32 %v589, %v576
    %v605 = vmul.f32 %v591, %v579
    %606 = vadd.xlane.f32.xlu0 %v604
    %v607 = vpop.xlane.xlu0 %606
    %608 = vadd.xlane.f32.xlu0 %v605
    %v609 = vpop.xlane.xlu0 %608
    %v610 = vrcp.pop %v593
    %v611 = vmul.f32 %v607, %v610
    %v612 = vrcp.pop %v595
    %v613 = vmul.f32 %v609, %v612
    %v614 = vsub.f32 %v600, %v611
    %v615 = vsub.f32 %v601, %v613
    %v616 = vmax.f32 %v614, 0.0
    %v617 = vmax.f32 %v615, 0.0
    %vm618 = vcmp.eq.f32.partialorder %v576, %v583
    %vm619 = vcmp.eq.f32.partialorder %v579, %v585
    %v620 = vsel %vm618, %v132, 128
    %v621 = vsel %vm619, %v132, 128
    %v622 = vand.u32 %v620, 65535
    %v623 = vshra.s32 %v620, 16
    %v624 = vcvt.s32.f32 %v622
    %v625 = vcvt.s32.f32 %v623
    %626 = vmin.xlane.f32.xlu0 %v625
    %v627 = vpop.xlane.xlu0 %626
    %vm628 = vcmp.eq.f32.partialorder %v625, %v627
    %v629 = vsel %vm628, %v624, inf
    %630 = vmin.xlane.f32.xlu0 %v629
    %v631 = vpop.xlane.xlu0 %630
    %v632 = vcvt.f32.s32 %v631
    %v633 = vcvt.f32.s32 %v627
    %v634 = vshll.u32 %v633, 16
    %v635 = vadd.s32 %v634, %v632
    %v636 = vand.u32 %v621, 65535
    %v637 = vshra.s32 %v621, 16
    %v638 = vcvt.s32.f32 %v636
    %v639 = vcvt.s32.f32 %v637
    %640 = vmin.xlane.f32.xlu0 %v639
    %v641 = vpop.xlane.xlu0 %640
    %vm642 = vcmp.eq.f32.partialorder %v639, %v641
    %v643 = vsel %vm642, %v638, inf
    %644 = vmin.xlane.f32.xlu0 %v643
    %v645 = vpop.xlane.xlu0 %644
    %v646 = vcvt.f32.s32 %v645
    %v647 = vcvt.f32.s32 %v641
    %v648 = vshll.u32 %v647, 16
    %v649 = vadd.s32 %v648, %v646
    %vm650 = vcmp.eq.s32.totalorder %v132, 0
    %v651 = vcvt.s32.f32 %v635
    %v652 = vcvt.s32.f32 %v649
    %vm653 = vcmp.eq.s32.totalorder %v132, 1
    %vm654 = vcmp.eq.s32.totalorder %v132, 2
    %v655 = vsel %vm654, %v616, 0.0
    %v656 = vsel %vm654, %v617, 0.0
    %v657 = vsel %vm653, %v602, %v655
    %v658 = vsel %vm653, %v603, %v656
    %v659 = vsel %vm650, %v651, %v657
    %v660 = vsel %vm650, %v652, %v658
    %661 = vst [vmem:[#allocation16] sm:$0xff] %v659
    %662 = vst [vmem:[#allocation16 + $0x8] sm:$0xff] %v660
    %v663 = vld [vmem:[#allocation9] sm:$0xff]
    %v664 = vld [vmem:[#allocation9 + $0x8] sm:$0xff]
    %v665 = vld [vmem:[#allocation9 + $0x10] sm:$0xff]
    %v666 = vld [vmem:[#allocation9 + $0x18] sm:$0xff]
    %v667 = vld [vmem:[#allocation9 + $0x20] sm:$0xff]
    %v668 = vld [vmem:[#allocation9 + $0x28] sm:$0xff]
    %v669 = vld [vmem:[#allocation9 + $0x30] sm:$0xff]
    %v670 = vld [vmem:[#allocation9 + $0x38] sm:$0xff]
    %v671 = vld [vmem:[#allocation9 + $0x40] sm:$0xff]
    %v672 = vld [vmem:[#allocation9 + $0x48] sm:$0xff]
    %v673 = vld [vmem:[#allocation9 + $0x50] sm:$0xff]
    %v674 = vld [vmem:[#allocation9 + $0x58] sm:$0xff]
    %v675 = vld [vmem:[#allocation9 + $0x60] sm:$0xff]
    %v676 = vld [vmem:[#allocation9 + $0x68] sm:$0xff]
    %v677 = vld [vmem:[#allocation9 + $0x70] sm:$0xff]
    %v678 = vld [vmem:[#allocation9 + $0x78] sm:$0xff]
    %v679 = vld [vmem:[#allocation9 + $0x80] sm:$0xff]
    %v680 = vld [vmem:[#allocation9 + $0x88] sm:$0xff]
    %v681 = vld [vmem:[#allocation9 + $0x90] sm:$0xff]
    %v682 = vld [vmem:[#allocation9 + $0x98] sm:$0xff]
    %v683 = vld [vmem:[#allocation9 + $0xa0] sm:$0xff]
    %v684 = vld [vmem:[#allocation9 + $0xa8] sm:$0xff]
    %v685 = vld [vmem:[#allocation9 + $0xb0] sm:$0xff]
    %v686 = vld [vmem:[#allocation9 + $0xb8] sm:$0xff]
    %v687 = vld [vmem:[#allocation9 + $0xc0] sm:$0xff]
    %v688 = vld [vmem:[#allocation9 + $0xc8] sm:$0xff]
    %v689 = vld [vmem:[#allocation9 + $0xd0] sm:$0xff]
    %v690 = vld [vmem:[#allocation9 + $0xd8] sm:$0xff]
    %v691 = vld [vmem:[#allocation9 + $0xe0] sm:$0xff]
    %v692 = vld [vmem:[#allocation9 + $0xe8] sm:$0xff]
    %v693 = vld [vmem:[#allocation9 + $0xf0] sm:$0xff]
    %v694 = vld [vmem:[#allocation9 + $0xf8] sm:$0xff]
    %v727 = vunpack.c.l.b16 %v663
    %v728 = vunpack.c.h.b16 %v663
    %v729 = vunpack.c.l.b16 %v664
    %v730 = vunpack.c.h.b16 %v664
    %v731 = vunpack.c.l.b16 %v665
    %v732 = vunpack.c.h.b16 %v665
    %v733 = vunpack.c.l.b16 %v666
    %v734 = vunpack.c.h.b16 %v666
    %v735 = vunpack.c.l.b16 %v667
    %v736 = vunpack.c.h.b16 %v667
    %v737 = vunpack.c.l.b16 %v668
    %v738 = vunpack.c.h.b16 %v668
    %v739 = vunpack.c.l.b16 %v669
    %v740 = vunpack.c.h.b16 %v669
    %v741 = vunpack.c.l.b16 %v670
    %v742 = vunpack.c.h.b16 %v670
    %v743 = vunpack.c.l.b16 %v671
    %v744 = vunpack.c.h.b16 %v671
    %v745 = vunpack.c.l.b16 %v672
    %v746 = vunpack.c.h.b16 %v672
    %v747 = vunpack.c.l.b16 %v673
    %v748 = vunpack.c.h.b16 %v673
    %v749 = vunpack.c.l.b16 %v674
    %v750 = vunpack.c.h.b16 %v674
    %v751 = vunpack.c.l.b16 %v675
    %v752 = vunpack.c.h.b16 %v675
    %v753 = vunpack.c.l.b16 %v676
    %v754 = vunpack.c.h.b16 %v676
    %v755 = vunpack.c.l.b16 %v677
    %v756 = vunpack.c.h.b16 %v677
    %v757 = vunpack.c.l.b16 %v678
    %v758 = vunpack.c.h.b16 %v678
    %v759 = vunpack.c.l.b16 %v679
    %v760 = vunpack.c.h.b16 %v679
    %v761 = vunpack.c.l.b16 %v680
    %v762 = vunpack.c.h.b16 %v680
    %v763 = vunpack.c.l.b16 %v681
    %v764 = vunpack.c.h.b16 %v681
    %v765 = vunpack.c.l.b16 %v682
    %v766 = vunpack.c.h.b16 %v682
    %v767 = vunpack.c.l.b16 %v683
    %v768 = vunpack.c.h.b16 %v683
    %v769 = vunpack.c.l.b16 %v684
    %v770 = vunpack.c.h.b16 %v684
    %v771 = vunpack.c.l.b16 %v685
    %v772 = vunpack.c.h.b16 %v685
    %v773 = vunpack.c.l.b16 %v686
    %v774 = vunpack.c.h.b16 %v686
    %v775 = vunpack.c.l.b16 %v687
    %v776 = vunpack.c.h.b16 %v687
    %v777 = vunpack.c.l.b16 %v688
    %v778 = vunpack.c.h.b16 %v688
    %v779 = vunpack.c.l.b16 %v689
    %v780 = vunpack.c.h.b16 %v689
    %v781 = vunpack.c.l.b16 %v690
    %v782 = vunpack.c.h.b16 %v690
    %v783 = vunpack.c.l.b16 %v691
    %v784 = vunpack.c.h.b16 %v691
    %v785 = vunpack.c.l.b16 %v692
    %v786 = vunpack.c.h.b16 %v692
    %v787 = vunpack.c.l.b16 %v693
    %v788 = vunpack.c.h.b16 %v693
    %v789 = vunpack.c.l.b16 %v694
    %v790 = vunpack.c.h.b16 %v694
    %v791 = vpack.c.b16 %v731, %v727
    %v792 = vpack.c.b16 %v732, %v728
    %v793 = vpack.c.b16 %v733, %v729
    %v794 = vpack.c.b16 %v734, %v730
    %v795 = vpack.c.b16 %v739, %v735
    %v796 = vpack.c.b16 %v740, %v736
    %v797 = vpack.c.b16 %v741, %v737
    %v798 = vpack.c.b16 %v742, %v738
    %v799 = vpack.c.b16 %v747, %v743
    %v800 = vpack.c.b16 %v748, %v744
    %v801 = vpack.c.b16 %v749, %v745
    %v802 = vpack.c.b16 %v750, %v746
    %v803 = vpack.c.b16 %v755, %v751
    %v804 = vpack.c.b16 %v756, %v752
    %v805 = vpack.c.b16 %v757, %v753
    %v806 = vpack.c.b16 %v758, %v754
    %v807 = vpack.c.b16 %v763, %v759
    %v808 = vpack.c.b16 %v764, %v760
    %v809 = vpack.c.b16 %v765, %v761
    %v810 = vpack.c.b16 %v766, %v762
    %v811 = vpack.c.b16 %v771, %v767
    %v812 = vpack.c.b16 %v772, %v768
    %v813 = vpack.c.b16 %v773, %v769
    %v814 = vpack.c.b16 %v774, %v770
    %v815 = vpack.c.b16 %v779, %v775
    %v816 = vpack.c.b16 %v780, %v776
    %v817 = vpack.c.b16 %v781, %v777
    %v818 = vpack.c.b16 %v782, %v778
    %v819 = vpack.c.b16 %v787, %v783
    %v820 = vpack.c.b16 %v788, %v784
    %v821 = vpack.c.b16 %v789, %v785
    %v822 = vpack.c.b16 %v790, %v786
    %855 = vmatprep.subr.bf16.mxu0 %v820
    %856 = vmatpush1.bf16.msra.mxu0 %v819
    %857 = vmatprep.subr.bf16.mxu0 %v816
    %858 = vmatpush1.bf16.msra.mxu0 %v815
    %859 = vmatprep.subr.bf16.mxu0 %v812
    %860 = vmatpush1.bf16.msra.mxu0 %v811
    %861 = vmatprep.subr.bf16.mxu0 %v808
    %862 = vmatpush1.bf16.msra.mxu0 %v807
    %863 = vmatprep.subr.bf16.mxu0 %v804
    %864 = vmatpush1.bf16.msra.mxu0 %v803
    %865 = vmatprep.subr.bf16.mxu0 %v800
    %866 = vmatpush1.bf16.msra.mxu0 %v799
    %867 = vmatprep.subr.bf16.mxu0 %v796
    %868 = vmatpush1.bf16.msra.mxu0 %v795
    %869 = vmatprep.subr.bf16.mxu0 %v792
    %870 = vmatpush1.bf16.msra.mxu0 %v791
    %871 = vmatprep.subr.bf16.mxu0 0
    %872 = vmatpush2.bf16.msra.mxu0 0
    %873 = vmatprep.subr.bf16.mxu0 0
    %874 = vmatpush2.bf16.msra.mxu0 0
    %875 = vmatprep.subr.bf16.mxu0 0
    %876 = vmatpush2.bf16.msra.mxu0 0
    %877 = vmatprep.subr.bf16.mxu0 0
    %878 = vmatpush2.bf16.msra.mxu0 0
    %879 = vmatprep.subr.bf16.mxu0 0
    %880 = vmatpush2.bf16.msra.mxu0 0
    %881 = vmatprep.subr.bf16.mxu0 0
    %882 = vmatpush2.bf16.msra.mxu0 0
    %883 = vmatprep.subr.bf16.mxu0 0
    %884 = vmatpush2.bf16.msra.mxu0 0
    %885 = vmatprep.subr.bf16.mxu0 0
    %886 = vmatpush2.bf16.msra.mxu0 0
    %887 = vmatprep.mubr.bf16.mxu0 0
    %888 = vmatmul.mubr.bf16.gmra.mxu0 %v486
    %v889 = vpop.f32.mrf.mxu0
    %v890 = vadd.f32 %v114, %v889
    %v891 = vpop.f32.mrf.mxu0
    %v892 = vadd.f32 %v118, %v891
    %v893 = vpop.f32.mrf.mxu0
    %v894 = vadd.f32 %v114, %v893
    %v895 = vpop.f32.mrf.mxu0
    %v896 = vadd.f32 %v118, %v895
    %897 = vdwg.mxu0
    %898 = vmatprep.subr.bf16.mxu0 %v822
    %899 = vmatpush1.bf16.msra.mxu0 %v821
    %900 = vmatprep.subr.bf16.mxu0 %v818
    %901 = vmatpush1.bf16.msra.mxu0 %v817
    %902 = vmatprep.subr.bf16.mxu0 %v814
    %903 = vmatpush1.bf16.msra.mxu0 %v813
    %904 = vmatprep.subr.bf16.mxu0 %v810
    %905 = vmatpush1.bf16.msra.mxu0 %v809
    %906 = vmatprep.subr.bf16.mxu0 %v806
    %907 = vmatpush1.bf16.msra.mxu0 %v805
    %908 = vmatprep.subr.bf16.mxu0 %v802
    %909 = vmatpush1.bf16.msra.mxu0 %v801
    %910 = vmatprep.subr.bf16.mxu0 %v798
    %911 = vmatpush1.bf16.msra.mxu0 %v797
    %912 = vmatprep.subr.bf16.mxu0 %v794
    %913 = vmatpush1.bf16.msra.mxu0 %v793
    %914 = vmatprep.subr.bf16.mxu0 0
    %915 = vmatpush2.bf16.msra.mxu0 0
    %916 = vmatprep.subr.bf16.mxu0 0
    %917 = vmatpush2.bf16.msra.mxu0 0
    %918 = vmatprep.subr.bf16.mxu0 0
    %919 = vmatpush2.bf16.msra.mxu0 0
    %920 = vmatprep.subr.bf16.mxu0 0
    %921 = vmatpush2.bf16.msra.mxu0 0
    %922 = vmatprep.subr.bf16.mxu0 0
    %923 = vmatpush2.bf16.msra.mxu0 0
    %924 = vmatprep.subr.bf16.mxu0 0
    %925 = vmatpush2.bf16.msra.mxu0 0
    %926 = vmatprep.subr.bf16.mxu0 0
    %927 = vmatpush2.bf16.msra.mxu0 0
    %928 = vmatprep.subr.bf16.mxu0 0
    %929 = vmatpush2.bf16.msra.mxu0 0
    %930 = vmatprep.mubr.bf16.mxu0 0
    %931 = vmatmul.mubr.bf16.gmra.mxu0 %v486
    %v932 = vpop.f32.mrf.mxu0
    %v933 = vadd.f32 %v122, %v932
    %v934 = vpop.f32.mrf.mxu0
    %v935 = vadd.f32 %v126, %v934
    %v936 = vpop.f32.mrf.mxu0
    %v937 = vadd.f32 %v122, %v936
    %v938 = vpop.f32.mrf.mxu0
    %v939 = vadd.f32 %v126, %v938
    %940 = vdwg.mxu0
    %v941 = vxor.u32 %v890, 2147483648
    %v942 = vxor.u32 %v894, 2147483648
    %v943 = vmul.f32 %v941, 1.442695
    %v944 = vpow.pop %v943
    %v945 = vmul.f32 %v942, 1.442695
    %v946 = vpow.pop %v945
    %v947 = vadd.f32 %v944, 1.0
    %v948 = vadd.f32 %v946, 1.0
    %v949 = vrcp.pop %v947
    %v950 = vmul.f32 1.0, %v949
    %v951 = vrcp.pop %v948
    %v952 = vmul.f32 1.0, %v951
    %v953 = vxor.u32 %v892, 2147483648
    %v954 = vxor.u32 %v896, 2147483648
    %v955 = vmul.f32 %v953, 1.442695
    %v956 = vpow.pop %v955
    %v957 = vmul.f32 %v954, 1.442695
    %v958 = vpow.pop %v957
    %v959 = vadd.f32 %v956, 1.0
    %v960 = vadd.f32 %v958, 1.0
    %v961 = vrcp.pop %v959
    %v962 = vmul.f32 1.0, %v961
    %v963 = vrcp.pop %v960
    %v964 = vmul.f32 1.0, %v963
    %v965 = vtanh.pop %v933
    %v966 = vtanh.pop %v937
    %v967 = vxor.u32 %v935, 2147483648
    %v968 = vxor.u32 %v939, 2147483648
    %v969 = vmul.f32 %v967, 1.442695
    %v970 = vpow.pop %v969
    %v971 = vmul.f32 %v968, 1.442695
    %v972 = vpow.pop %v971
    %v973 = vadd.f32 %v970, 1.0
    %v974 = vadd.f32 %v972, 1.0
    %v975 = vrcp.pop %v973
    %v976 = vmul.f32 1.0, %v975
    %v977 = vrcp.pop %v974
    %v978 = vmul.f32 1.0, %v977
    %v979 = vmul.f32 %v962, %v458
    %v980 = vmul.f32 %v964, %v459
    %v981 = vmul.f32 %v950, %v965
    %v982 = vmul.f32 %v952, %v966
    %v983 = vadd.f32 %v979, %v981
    %v984 = vadd.f32 %v980, %v982
    %v985 = vtanh.pop %v983
    %v986 = vtanh.pop %v984
    %v987 = vmul.f32 %v976, %v985
    %v988 = vmul.f32 %v978, %v986
    %s989 = sld [smem:[#allocation2 + $0x1]]
    %s990 = smul.u32 %s989, 16
    %s991 = smul.addr %s990, 4
    %s992 = scalar_lea.vmem [#allocation12], %s991
    %v993 = vld [vmem:[%s992] sm:$0xf]
    %v994 = vld [vmem:[%s992 + $0x4] sm:$0xf]
    %v995 = vld [vmem:[%s992 + $0x8] sm:$0xf]
    %v996 = vld [vmem:[%s992 + $0xc] sm:$0xf]
    %v997 = vld [vmem:[%s992 + $0x10] sm:$0xf]
    %v998 = vld [vmem:[%s992 + $0x14] sm:$0xf]
    %v999 = vld [vmem:[%s992 + $0x18] sm:$0xf]
    %v1000 = vld [vmem:[%s992 + $0x1c] sm:$0xf]
    %v1001 = vld [vmem:[%s992 + $0x20] sm:$0xf]
    %v1002 = vld [vmem:[%s992 + $0x24] sm:$0xf]
    %v1003 = vld [vmem:[%s992 + $0x28] sm:$0xf]
    %v1004 = vld [vmem:[%s992 + $0x2c] sm:$0xf]
    %v1005 = vld [vmem:[%s992 + $0x30] sm:$0xf]
    %v1006 = vld [vmem:[%s992 + $0x34] sm:$0xf]
    %v1007 = vld [vmem:[%s992 + $0x38] sm:$0xf]
    %v1008 = vld [vmem:[%s992 + $0x3c] sm:$0xf]
    %s1009 = scalar_lea.vmem %s6, %s989
    %v1010 = vld [vmem:[%s1009] sm:$0x1]
    %v1011 = vpack.c.bf16 %v988, %v987
    %v1013 = vlaneseq
    %v1014 = vshrl.u32 %v1013, 7
    %v1015 = vsub.s32 0, %v1014
    %v1016 = vrot.slane %v1010, %v1015
    %v1034 = vunpack.c.l.b16 %v993
    %v1035 = vunpack.c.l.b16 %v994
    %v1036 = vunpack.c.l.b16 %v995
    %v1037 = vunpack.c.l.b16 %v996
    %v1038 = vunpack.c.l.b16 %v997
    %v1039 = vunpack.c.l.b16 %v998
    %v1040 = vunpack.c.l.b16 %v999
    %v1041 = vunpack.c.l.b16 %v1000
    %v1042 = vunpack.c.l.b16 %v1001
    %v1043 = vunpack.c.l.b16 %v1002
    %v1044 = vunpack.c.l.b16 %v1003
    %v1045 = vunpack.c.l.b16 %v1004
    %v1046 = vunpack.c.l.b16 %v1005
    %v1047 = vunpack.c.l.b16 %v1006
    %v1048 = vunpack.c.l.b16 %v1007
    %v1049 = vunpack.c.l.b16 %v1008
    %v1050 = vpack.c.b16 %v1035, %v1034
    %v1051 = vpack.c.b16 %v1037, %v1036
    %v1052 = vpack.c.b16 %v1039, %v1038
    %v1053 = vpack.c.b16 %v1041, %v1040
    %v1054 = vpack.c.b16 %v1043, %v1042
    %v1055 = vpack.c.b16 %v1045, %v1044
    %v1056 = vpack.c.b16 %v1047, %v1046
    %v1057 = vpack.c.b16 %v1049, %v1048
    %1066 = vmatprep.subr.bf16.mxu0 0
    %1067 = vmatpush1.bf16.msra.mxu0 %v1057
    %1068 = vmatprep.subr.bf16.mxu0 0
    %1069 = vmatpush1.bf16.msra.mxu0 %v1056
    %1070 = vmatprep.subr.bf16.mxu0 0
    %1071 = vmatpush1.bf16.msra.mxu0 %v1055
    %1072 = vmatprep.subr.bf16.mxu0 0
    %1073 = vmatpush1.bf16.msra.mxu0 %v1054
    %1074 = vmatprep.subr.bf16.mxu0 0
    %1075 = vmatpush1.bf16.msra.mxu0 %v1053
    %1076 = vmatprep.subr.bf16.mxu0 0
    %1077 = vmatpush1.bf16.msra.mxu0 %v1052
    %1078 = vmatprep.subr.bf16.mxu0 0
    %1079 = vmatpush1.bf16.msra.mxu0 %v1051
    %1080 = vmatprep.subr.bf16.mxu0 0
    %1081 = vmatpush1.bf16.msra.mxu0 %v1050
    %1082 = vmatprep.subr.bf16.mxu0 0
    %1083 = vmatpush2.bf16.msra.mxu0 0
    %1084 = vmatprep.subr.bf16.mxu0 0
    %1085 = vmatpush2.bf16.msra.mxu0 0
    %1086 = vmatprep.subr.bf16.mxu0 0
    %1087 = vmatpush2.bf16.msra.mxu0 0
    %1088 = vmatprep.subr.bf16.mxu0 0
    %1089 = vmatpush2.bf16.msra.mxu0 0
    %1090 = vmatprep.subr.bf16.mxu0 0
    %1091 = vmatpush2.bf16.msra.mxu0 0
    %1092 = vmatprep.subr.bf16.mxu0 0
    %1093 = vmatpush2.bf16.msra.mxu0 0
    %1094 = vmatprep.subr.bf16.mxu0 0
    %1095 = vmatpush2.bf16.msra.mxu0 0
    %1096 = vmatprep.subr.bf16.mxu0 0
    %1097 = vmatpush2.bf16.msra.mxu0 0
    %1098 = vmatprep.mubr.bf16.mxu0 0
    %1099 = vmatmul.mubr.bf16.gmra.mxu0 %v1011
    %v1100 = vpop.f32.mrf.mxu0
    %v1101 = vadd.f32 %v1016, %v1100
    %v1102 = vpop.f32.mrf.mxu0
    %v1103 = vpop.f32.mrf.mxu0
    %v1104 = vadd.f32 %v1016, %v1103
    %v1105 = vpop.f32.mrf.mxu0
    %1106 = vdwg.mxu0
    %1107 = vmax.xlane.f32.xlu0 %v1101
    %v1108 = vpop.xlane.xlu0 %1107
    %1109 = vmax.xlane.f32.xlu0 %v1104
    %v1110 = vpop.xlane.xlu0 %1109
    %v1111 = vsub.f32 %v1101, %v1108
    %v1112 = vsub.f32 %v1104, %v1110
    %v1113 = vmul.f32 %v1111, 1.442695
    %v1114 = vpow.pop %v1113
    %v1115 = vmul.f32 %v1112, 1.442695
    %v1116 = vpow.pop %v1115
    %1117 = vadd.xlane.f32.xlu0 %v1114
    %v1118 = vpop.xlane.xlu0 %1117
    %1119 = vadd.xlane.f32.xlu0 %v1116
    %v1120 = vpop.xlane.xlu0 %1119
    %v1121 = vlog2.pop %v1118
    %v1122 = vmul.f32 %v1121, 0.6931472
    %v1123 = vlog2.pop %v1120
    %v1124 = vmul.f32 %v1123, 0.6931472
    %v1125 = vadd.f32 %v1108, %v1122
    %v1126 = vadd.f32 %v1110, %v1124
    %v1127 = vsub.f32 %v1108, %v1125
    %v1128 = vsub.f32 %v1110, %v1126
    %v1129 = vmul.f32 %v1114, %v1101
    %v1130 = vmul.f32 %v1116, %v1104
    %1131 = vadd.xlane.f32.xlu0 %v1129
    %v1132 = vpop.xlane.xlu0 %1131
    %1133 = vadd.xlane.f32.xlu0 %v1130
    %v1134 = vpop.xlane.xlu0 %1133
    %v1135 = vrcp.pop %v1118
    %v1136 = vmul.f32 %v1132, %v1135
    %v1137 = vrcp.pop %v1120
    %v1138 = vmul.f32 %v1134, %v1137
    %v1139 = vsub.f32 %v1125, %v1136
    %v1140 = vsub.f32 %v1126, %v1138
    %v1141 = vmax.f32 %v1139, 0.0
    %v1142 = vmax.f32 %v1140, 0.0
    %vm1143 = vcmp.eq.f32.partialorder %v1101, %v1108
    %vm1144 = vcmp.eq.f32.partialorder %v1104, %v1110
    %v1145 = vsel %vm1143, %v132, 128
    %v1146 = vsel %vm1144, %v132, 128
    %v1147 = vand.u32 %v1145, 65535
    %v1148 = vshra.s32 %v1145, 16
    %v1149 = vcvt.s32.f32 %v1147
    %v1150 = vcvt.s32.f32 %v1148
    %1151 = vmin.xlane.f32.xlu0 %v1150
    %v1152 = vpop.xlane.xlu0 %1151
    %vm1153 = vcmp.eq.f32.partialorder %v1150, %v1152
    %v1154 = vsel %vm1153, %v1149, inf
    %1155 = vmin.xlane.f32.xlu0 %v1154
    %v1156 = vpop.xlane.xlu0 %1155
    %v1157 = vcvt.f32.s32 %v1156
    %v1158 = vcvt.f32.s32 %v1152
    %v1159 = vshll.u32 %v1158, 16
    %v1160 = vadd.s32 %v1159, %v1157
    %v1161 = vand.u32 %v1146, 65535
    %v1162 = vshra.s32 %v1146, 16
    %v1163 = vcvt.s32.f32 %v1161
    %v1164 = vcvt.s32.f32 %v1162
    %1165 = vmin.xlane.f32.xlu0 %v1164
    %v1166 = vpop.xlane.xlu0 %1165
    %vm1167 = vcmp.eq.f32.partialorder %v1164, %v1166
    %v1168 = vsel %vm1167, %v1163, inf
    %1169 = vmin.xlane.f32.xlu0 %v1168
    %v1170 = vpop.xlane.xlu0 %1169
    %v1171 = vcvt.f32.s32 %v1170
    %v1172 = vcvt.f32.s32 %v1166
    %v1173 = vshll.u32 %v1172, 16
    %v1174 = vadd.s32 %v1173, %v1171
    %v1175 = vcvt.s32.f32 %v1160
    %v1176 = vcvt.s32.f32 %v1174
    %v1177 = vsel %vm654, %v1141, 0.0
    %v1178 = vsel %vm654, %v1142, 0.0
    %v1179 = vsel %vm653, %v1127, %v1177
    %v1180 = vsel %vm653, %v1128, %v1178
    %v1181 = vsel %vm650, %v1175, %v1179
    %v1182 = vsel %vm650, %v1176, %v1180
    %s1183 = scalar_lea.vmem [#allocation16], 16
    %1184 = vst [vmem:[%s1183] sm:$0xff] %v1181
    %1185 = vst [vmem:[%s1183 + $0x8] sm:$0xff] %v1182
    %v1186 = vld [vmem:[#allocation9] sm:$0xff]
    %v1187 = vld [vmem:[#allocation9 + $0x8] sm:$0xff]
    %v1188 = vld [vmem:[#allocation9 + $0x10] sm:$0xff]
    %v1189 = vld [vmem:[#allocation9 + $0x18] sm:$0xff]
    %v1190 = vld [vmem:[#allocation9 + $0x20] sm:$0xff]
    %v1191 = vld [vmem:[#allocation9 + $0x28] sm:$0xff]
    %v1192 = vld [vmem:[#allocation9 + $0x30] sm:$0xff]
    %v1193 = vld [vmem:[#allocation9 + $0x38] sm:$0xff]
    %v1194 = vld [vmem:[#allocation9 + $0x40] sm:$0xff]
    %v1195 = vld [vmem:[#allocation9 + $0x48] sm:$0xff]
    %v1196 = vld [vmem:[#allocation9 + $0x50] sm:$0xff]
    %v1197 = vld [vmem:[#allocation9 + $0x58] sm:$0xff]
    %v1198 = vld [vmem:[#allocation9 + $0x60] sm:$0xff]
    %v1199 = vld [vmem:[#allocation9 + $0x68] sm:$0xff]
    %v1200 = vld [vmem:[#allocation9 + $0x70] sm:$0xff]
    %v1201 = vld [vmem:[#allocation9 + $0x78] sm:$0xff]
    %v1202 = vld [vmem:[#allocation9 + $0x80] sm:$0xff]
    %v1203 = vld [vmem:[#allocation9 + $0x88] sm:$0xff]
    %v1204 = vld [vmem:[#allocation9 + $0x90] sm:$0xff]
    %v1205 = vld [vmem:[#allocation9 + $0x98] sm:$0xff]
    %v1206 = vld [vmem:[#allocation9 + $0xa0] sm:$0xff]
    %v1207 = vld [vmem:[#allocation9 + $0xa8] sm:$0xff]
    %v1208 = vld [vmem:[#allocation9 + $0xb0] sm:$0xff]
    %v1209 = vld [vmem:[#allocation9 + $0xb8] sm:$0xff]
    %v1210 = vld [vmem:[#allocation9 + $0xc0] sm:$0xff]
    %v1211 = vld [vmem:[#allocation9 + $0xc8] sm:$0xff]
    %v1212 = vld [vmem:[#allocation9 + $0xd0] sm:$0xff]
    %v1213 = vld [vmem:[#allocation9 + $0xd8] sm:$0xff]
    %v1214 = vld [vmem:[#allocation9 + $0xe0] sm:$0xff]
    %v1215 = vld [vmem:[#allocation9 + $0xe8] sm:$0xff]
    %v1216 = vld [vmem:[#allocation9 + $0xf0] sm:$0xff]
    %v1217 = vld [vmem:[#allocation9 + $0xf8] sm:$0xff]
    %v1250 = vunpack.c.l.b16 %v1186
    %v1251 = vunpack.c.h.b16 %v1186
    %v1252 = vunpack.c.l.b16 %v1187
    %v1253 = vunpack.c.h.b16 %v1187
    %v1254 = vunpack.c.l.b16 %v1188
    %v1255 = vunpack.c.h.b16 %v1188
    %v1256 = vunpack.c.l.b16 %v1189
    %v1257 = vunpack.c.h.b16 %v1189
    %v1258 = vunpack.c.l.b16 %v1190
    %v1259 = vunpack.c.h.b16 %v1190
    %v1260 = vunpack.c.l.b16 %v1191
    %v1261 = vunpack.c.h.b16 %v1191
    %v1262 = vunpack.c.l.b16 %v1192
    %v1263 = vunpack.c.h.b16 %v1192
    %v1264 = vunpack.c.l.b16 %v1193
    %v1265 = vunpack.c.h.b16 %v1193
    %v1266 = vunpack.c.l.b16 %v1194
    %v1267 = vunpack.c.h.b16 %v1194
    %v1268 = vunpack.c.l.b16 %v1195
    %v1269 = vunpack.c.h.b16 %v1195
    %v1270 = vunpack.c.l.b16 %v1196
    %v1271 = vunpack.c.h.b16 %v1196
    %v1272 = vunpack.c.l.b16 %v1197
    %v1273 = vunpack.c.h.b16 %v1197
    %v1274 = vunpack.c.l.b16 %v1198
    %v1275 = vunpack.c.h.b16 %v1198
    %v1276 = vunpack.c.l.b16 %v1199
    %v1277 = vunpack.c.h.b16 %v1199
    %v1278 = vunpack.c.l.b16 %v1200
    %v1279 = vunpack.c.h.b16 %v1200
    %v1280 = vunpack.c.l.b16 %v1201
    %v1281 = vunpack.c.h.b16 %v1201
    %v1282 = vunpack.c.l.b16 %v1202
    %v1283 = vunpack.c.h.b16 %v1202
    %v1284 = vunpack.c.l.b16 %v1203
    %v1285 = vunpack.c.h.b16 %v1203
    %v1286 = vunpack.c.l.b16 %v1204
    %v1287 = vunpack.c.h.b16 %v1204
    %v1288 = vunpack.c.l.b16 %v1205
    %v1289 = vunpack.c.h.b16 %v1205
    %v1290 = vunpack.c.l.b16 %v1206
    %v1291 = vunpack.c.h.b16 %v1206
    %v1292 = vunpack.c.l.b16 %v1207
    %v1293 = vunpack.c.h.b16 %v1207
    %v1294 = vunpack.c.l.b16 %v1208
    %v1295 = vunpack.c.h.b16 %v1208
    %v1296 = vunpack.c.l.b16 %v1209
    %v1297 = vunpack.c.h.b16 %v1209
    %v1298 = vunpack.c.l.b16 %v1210
    %v1299 = vunpack.c.h.b16 %v1210
    %v1300 = vunpack.c.l.b16 %v1211
    %v1301 = vunpack.c.h.b16 %v1211
    %v1302 = vunpack.c.l.b16 %v1212
    %v1303 = vunpack.c.h.b16 %v1212
    %v1304 = vunpack.c.l.b16 %v1213
    %v1305 = vunpack.c.h.b16 %v1213
    %v1306 = vunpack.c.l.b16 %v1214
    %v1307 = vunpack.c.h.b16 %v1214
    %v1308 = vunpack.c.l.b16 %v1215
    %v1309 = vunpack.c.h.b16 %v1215
    %v1310 = vunpack.c.l.b16 %v1216
    %v1311 = vunpack.c.h.b16 %v1216
    %v1312 = vunpack.c.l.b16 %v1217
    %v1313 = vunpack.c.h.b16 %v1217
    %v1314 = vpack.c.b16 %v1254, %v1250
    %v1315 = vpack.c.b16 %v1255, %v1251
    %v1316 = vpack.c.b16 %v1256, %v1252
    %v1317 = vpack.c.b16 %v1257, %v1253
    %v1318 = vpack.c.b16 %v1262, %v1258
    %v1319 = vpack.c.b16 %v1263, %v1259
    %v1320 = vpack.c.b16 %v1264, %v1260
    %v1321 = vpack.c.b16 %v1265, %v1261
    %v1322 = vpack.c.b16 %v1270, %v1266
    %v1323 = vpack.c.b16 %v1271, %v1267
    %v1324 = vpack.c.b16 %v1272, %v1268
    %v1325 = vpack.c.b16 %v1273, %v1269
    %v1326 = vpack.c.b16 %v1278, %v1274
    %v1327 = vpack.c.b16 %v1279, %v1275
    %v1328 = vpack.c.b16 %v1280, %v1276
    %v1329 = vpack.c.b16 %v1281, %v1277
    %v1330 = vpack.c.b16 %v1286, %v1282
    %v1331 = vpack.c.b16 %v1287, %v1283
    %v1332 = vpack.c.b16 %v1288, %v1284
    %v1333 = vpack.c.b16 %v1289, %v1285
    %v1334 = vpack.c.b16 %v1294, %v1290
    %v1335 = vpack.c.b16 %v1295, %v1291
    %v1336 = vpack.c.b16 %v1296, %v1292
    %v1337 = vpack.c.b16 %v1297, %v1293
    %v1338 = vpack.c.b16 %v1302, %v1298
    %v1339 = vpack.c.b16 %v1303, %v1299
    %v1340 = vpack.c.b16 %v1304, %v1300
    %v1341 = vpack.c.b16 %v1305, %v1301
    %v1342 = vpack.c.b16 %v1310, %v1306
    %v1343 = vpack.c.b16 %v1311, %v1307
    %v1344 = vpack.c.b16 %v1312, %v1308
    %v1345 = vpack.c.b16 %v1313, %v1309
    %1378 = vmatprep.subr.bf16.mxu0 %v1343
    %1379 = vmatpush1.bf16.msra.mxu0 %v1342
    %1380 = vmatprep.subr.bf16.mxu0 %v1339
    %1381 = vmatpush1.bf16.msra.mxu0 %v1338
    %1382 = vmatprep.subr.bf16.mxu0 %v1335
    %1383 = vmatpush1.bf16.msra.mxu0 %v1334
    %1384 = vmatprep.subr.bf16.mxu0 %v1331
    %1385 = vmatpush1.bf16.msra.mxu0 %v1330
    %1386 = vmatprep.subr.bf16.mxu0 %v1327
    %1387 = vmatpush1.bf16.msra.mxu0 %v1326
    %1388 = vmatprep.subr.bf16.mxu0 %v1323
    %1389 = vmatpush1.bf16.msra.mxu0 %v1322
    %1390 = vmatprep.subr.bf16.mxu0 %v1319
    %1391 = vmatpush1.bf16.msra.mxu0 %v1318
    %1392 = vmatprep.subr.bf16.mxu0 %v1315
    %1393 = vmatpush1.bf16.msra.mxu0 %v1314
    %1394 = vmatprep.subr.bf16.mxu0 0
    %1395 = vmatpush2.bf16.msra.mxu0 0
    %1396 = vmatprep.subr.bf16.mxu0 0
    %1397 = vmatpush2.bf16.msra.mxu0 0
    %1398 = vmatprep.subr.bf16.mxu0 0
    %1399 = vmatpush2.bf16.msra.mxu0 0
    %1400 = vmatprep.subr.bf16.mxu0 0
    %1401 = vmatpush2.bf16.msra.mxu0 0
    %1402 = vmatprep.subr.bf16.mxu0 0
    %1403 = vmatpush2.bf16.msra.mxu0 0
    %1404 = vmatprep.subr.bf16.mxu0 0
    %1405 = vmatpush2.bf16.msra.mxu0 0
    %1406 = vmatprep.subr.bf16.mxu0 0
    %1407 = vmatpush2.bf16.msra.mxu0 0
    %1408 = vmatprep.subr.bf16.mxu0 0
    %1409 = vmatpush2.bf16.msra.mxu0 0
    %1410 = vmatprep.mubr.bf16.mxu0 0
    %1411 = vmatmul.mubr.bf16.gmra.mxu0 %v1011
    %v1412 = vpop.f32.mrf.mxu0
    %v1413 = vadd.f32 %v114, %v1412
    %v1414 = vpop.f32.mrf.mxu0
    %v1415 = vadd.f32 %v118, %v1414
    %v1416 = vpop.f32.mrf.mxu0
    %v1417 = vadd.f32 %v114, %v1416
    %v1418 = vpop.f32.mrf.mxu0
    %v1419 = vadd.f32 %v118, %v1418
    %1420 = vdwg.mxu0
    %1421 = vmatprep.subr.bf16.mxu0 %v1345
    %1422 = vmatpush1.bf16.msra.mxu0 %v1344
    %1423 = vmatprep.subr.bf16.mxu0 %v1341
    %1424 = vmatpush1.bf16.msra.mxu0 %v1340
    %1425 = vmatprep.subr.bf16.mxu0 %v1337
    %1426 = vmatpush1.bf16.msra.mxu0 %v1336
    %1427 = vmatprep.subr.bf16.mxu0 %v1333
    %1428 = vmatpush1.bf16.msra.mxu0 %v1332
    %1429 = vmatprep.subr.bf16.mxu0 %v1329
    %1430 = vmatpush1.bf16.msra.mxu0 %v1328
    %1431 = vmatprep.subr.bf16.mxu0 %v1325
    %1432 = vmatpush1.bf16.msra.mxu0 %v1324
    %1433 = vmatprep.subr.bf16.mxu0 %v1321
    %1434 = vmatpush1.bf16.msra.mxu0 %v1320
    %1435 = vmatprep.subr.bf16.mxu0 %v1317
    %1436 = vmatpush1.bf16.msra.mxu0 %v1316
    %1437 = vmatprep.subr.bf16.mxu0 0
    %1438 = vmatpush2.bf16.msra.mxu0 0
    %1439 = vmatprep.subr.bf16.mxu0 0
    %1440 = vmatpush2.bf16.msra.mxu0 0
    %1441 = vmatprep.subr.bf16.mxu0 0
    %1442 = vmatpush2.bf16.msra.mxu0 0
    %1443 = vmatprep.subr.bf16.mxu0 0
    %1444 = vmatpush2.bf16.msra.mxu0 0
    %1445 = vmatprep.subr.bf16.mxu0 0
    %1446 = vmatpush2.bf16.msra.mxu0 0
    %1447 = vmatprep.subr.bf16.mxu0 0
    %1448 = vmatpush2.bf16.msra.mxu0 0
    %1449 = vmatprep.subr.bf16.mxu0 0
    %1450 = vmatpush2.bf16.msra.mxu0 0
    %1451 = vmatprep.subr.bf16.mxu0 0
    %1452 = vmatpush2.bf16.msra.mxu0 0
    %1453 = vmatprep.mubr.bf16.mxu0 0
    %1454 = vmatmul.mubr.bf16.gmra.mxu0 %v1011
    %v1455 = vpop.f32.mrf.mxu0
    %v1456 = vadd.f32 %v122, %v1455
    %v1457 = vpop.f32.mrf.mxu0
    %v1458 = vadd.f32 %v126, %v1457
    %v1459 = vpop.f32.mrf.mxu0
    %v1460 = vadd.f32 %v122, %v1459
    %v1461 = vpop.f32.mrf.mxu0
    %v1462 = vadd.f32 %v126, %v1461
    %1463 = vdwg.mxu0
    %v1464 = vxor.u32 %v1413, 2147483648
    %v1465 = vxor.u32 %v1417, 2147483648
    %v1466 = vmul.f32 %v1464, 1.442695
    %v1467 = vpow.pop %v1466
    %v1468 = vmul.f32 %v1465, 1.442695
    %v1469 = vpow.pop %v1468
    %v1470 = vadd.f32 %v1467, 1.0
    %v1471 = vadd.f32 %v1469, 1.0
    %v1472 = vrcp.pop %v1470
    %v1473 = vmul.f32 1.0, %v1472
    %v1474 = vrcp.pop %v1471
    %v1475 = vmul.f32 1.0, %v1474
    %v1476 = vxor.u32 %v1415, 2147483648
    %v1477 = vxor.u32 %v1419, 2147483648
    %v1478 = vmul.f32 %v1476, 1.442695
    %v1479 = vpow.pop %v1478
    %v1480 = vmul.f32 %v1477, 1.442695
    %v1481 = vpow.pop %v1480
    %v1482 = vadd.f32 %v1479, 1.0
    %v1483 = vadd.f32 %v1481, 1.0
    %v1484 = vrcp.pop %v1482
    %v1485 = vmul.f32 1.0, %v1484
    %v1486 = vrcp.pop %v1483
    %v1487 = vmul.f32 1.0, %v1486
    %v1488 = vtanh.pop %v1456
    %v1489 = vtanh.pop %v1460
    %v1490 = vxor.u32 %v1458, 2147483648
    %v1491 = vxor.u32 %v1462, 2147483648
    %v1492 = vmul.f32 %v1490, 1.442695
    %v1493 = vpow.pop %v1492
    %v1494 = vmul.f32 %v1491, 1.442695
    %v1495 = vpow.pop %v1494
    %v1496 = vadd.f32 %v1493, 1.0
    %v1497 = vadd.f32 %v1495, 1.0
    %v1498 = vrcp.pop %v1496
    %v1499 = vmul.f32 1.0, %v1498
    %v1500 = vrcp.pop %v1497
    %v1501 = vmul.f32 1.0, %v1500
    %v1502 = vmul.f32 %v1485, %v983
    %v1503 = vmul.f32 %v1487, %v984
    %v1504 = vmul.f32 %v1473, %v1488
    %v1505 = vmul.f32 %v1475, %v1489
    %v1506 = vadd.f32 %v1502, %v1504
    %v1507 = vadd.f32 %v1503, %v1505
    %v1508 = vtanh.pop %v1506
    %v1509 = vtanh.pop %v1507
    %v1510 = vmul.f32 %v1499, %v1508
    %v1511 = vmul.f32 %v1501, %v1509
    %s1512 = sld [smem:[#allocation2 + $0x2]]
    %s1513 = smul.u32 %s1512, 16
    %s1514 = smul.addr %s1513, 4
    %s1515 = scalar_lea.vmem [#allocation12], %s1514
    %v1516 = vld [vmem:[%s1515] sm:$0xf]
    %v1517 = vld [vmem:[%s1515 + $0x4] sm:$0xf]
    %v1518 = vld [vmem:[%s1515 + $0x8] sm:$0xf]
    %v1519 = vld [vmem:[%s1515 + $0xc] sm:$0xf]
    %v1520 = vld [vmem:[%s1515 + $0x10] sm:$0xf]
    %v1521 = vld [vmem:[%s1515 + $0x14] sm:$0xf]
    %v1522 = vld [vmem:[%s1515 + $0x18] sm:$0xf]
    %v1523 = vld [vmem:[%s1515 + $0x1c] sm:$0xf]
    %v1524 = vld [vmem:[%s1515 + $0x20] sm:$0xf]
    %v1525 = vld [vmem:[%s1515 + $0x24] sm:$0xf]
    %v1526 = vld [vmem:[%s1515 + $0x28] sm:$0xf]
    %v1527 = vld [vmem:[%s1515 + $0x2c] sm:$0xf]
    %v1528 = vld [vmem:[%s1515 + $0x30] sm:$0xf]
    %v1529 = vld [vmem:[%s1515 + $0x34] sm:$0xf]
    %v1530 = vld [vmem:[%s1515 + $0x38] sm:$0xf]
    %v1531 = vld [vmem:[%s1515 + $0x3c] sm:$0xf]
    %s1532 = scalar_lea.vmem %s6, %s1512
    %v1533 = vld [vmem:[%s1532] sm:$0x1]
    %v1534 = vpack.c.bf16 %v1511, %v1510
    %v1536 = vlaneseq
    %v1537 = vshrl.u32 %v1536, 7
    %v1538 = vsub.s32 0, %v1537
    %v1539 = vrot.slane %v1533, %v1538
    %v1557 = vunpack.c.l.b16 %v1516
    %v1558 = vunpack.c.l.b16 %v1517
    %v1559 = vunpack.c.l.b16 %v1518
    %v1560 = vunpack.c.l.b16 %v1519
    %v1561 = vunpack.c.l.b16 %v1520
    %v1562 = vunpack.c.l.b16 %v1521
    %v1563 = vunpack.c.l.b16 %v1522
    %v1564 = vunpack.c.l.b16 %v1523
    %v1565 = vunpack.c.l.b16 %v1524
    %v1566 = vunpack.c.l.b16 %v1525
    %v1567 = vunpack.c.l.b16 %v1526
    %v1568 = vunpack.c.l.b16 %v1527
    %v1569 = vunpack.c.l.b16 %v1528
    %v1570 = vunpack.c.l.b16 %v1529
    %v1571 = vunpack.c.l.b16 %v1530
    %v1572 = vunpack.c.l.b16 %v1531
    %v1573 = vpack.c.b16 %v1558, %v1557
    %v1574 = vpack.c.b16 %v1560, %v1559
    %v1575 = vpack.c.b16 %v1562, %v1561
    %v1576 = vpack.c.b16 %v1564, %v1563
    %v1577 = vpack.c.b16 %v1566, %v1565
    %v1578 = vpack.c.b16 %v1568, %v1567
    %v1579 = vpack.c.b16 %v1570, %v1569
    %v1580 = vpack.c.b16 %v1572, %v1571
    %1589 = vmatprep.subr.bf16.mxu0 0
    %1590 = vmatpush1.bf16.msra.mxu0 %v1580
    %1591 = vmatprep.subr.bf16.mxu0 0
    %1592 = vmatpush1.bf16.msra.mxu0 %v1579
    %1593 = vmatprep.subr.bf16.mxu0 0
    %1594 = vmatpush1.bf16.msra.mxu0 %v1578
    %1595 = vmatprep.subr.bf16.mxu0 0
    %1596 = vmatpush1.bf16.msra.mxu0 %v1577
    %1597 = vmatprep.subr.bf16.mxu0 0
    %1598 = vmatpush1.bf16.msra.mxu0 %v1576
    %1599 = vmatprep.subr.bf16.mxu0 0
    %1600 = vmatpush1.bf16.msra.mxu0 %v1575
    %1601 = vmatprep.subr.bf16.mxu0 0
    %1602 = vmatpush1.bf16.msra.mxu0 %v1574
    %1603 = vmatprep.subr.bf16.mxu0 0
    %1604 = vmatpush1.bf16.msra.mxu0 %v1573
    %1605 = vmatprep.subr.bf16.mxu0 0
    %1606 = vmatpush2.bf16.msra.mxu0 0
    %1607 = vmatprep.subr.bf16.mxu0 0
    %1608 = vmatpush2.bf16.msra.mxu0 0
    %1609 = vmatprep.subr.bf16.mxu0 0
    %1610 = vmatpush2.bf16.msra.mxu0 0
    %1611 = vmatprep.subr.bf16.mxu0 0
    %1612 = vmatpush2.bf16.msra.mxu0 0
    %1613 = vmatprep.subr.bf16.mxu0 0
    %1614 = vmatpush2.bf16.msra.mxu0 0
    %1615 = vmatprep.subr.bf16.mxu0 0
    %1616 = vmatpush2.bf16.msra.mxu0 0
    %1617 = vmatprep.subr.bf16.mxu0 0
    %1618 = vmatpush2.bf16.msra.mxu0 0
    %1619 = vmatprep.subr.bf16.mxu0 0
    %1620 = vmatpush2.bf16.msra.mxu0 0
    %1621 = vmatprep.mubr.bf16.mxu0 0
    %1622 = vmatmul.mubr.bf16.gmra.mxu0 %v1534
    %v1623 = vpop.f32.mrf.mxu0
    %v1624 = vadd.f32 %v1539, %v1623
    %v1625 = vpop.f32.mrf.mxu0
    %v1626 = vpop.f32.mrf.mxu0
    %v1627 = vadd.f32 %v1539, %v1626
    %v1628 = vpop.f32.mrf.mxu0
    %1629 = vdwg.mxu0
    %1630 = vmax.xlane.f32.xlu0 %v1624
    %v1631 = vpop.xlane.xlu0 %1630
    %1632 = vmax.xlane.f32.xlu0 %v1627
    %v1633 = vpop.xlane.xlu0 %1632
    %v1634 = vsub.f32 %v1624, %v1631
    %v1635 = vsub.f32 %v1627, %v1633
    %v1636 = vmul.f32 %v1634, 1.442695
    %v1637 = vpow.pop %v1636
    %v1638 = vmul.f32 %v1635, 1.442695
    %v1639 = vpow.pop %v1638
    %1640 = vadd.xlane.f32.xlu0 %v1637
    %v1641 = vpop.xlane.xlu0 %1640
    %1642 = vadd.xlane.f32.xlu0 %v1639
    %v1643 = vpop.xlane.xlu0 %1642
    %v1644 = vlog2.pop %v1641
    %v1645 = vmul.f32 %v1644, 0.6931472
    %v1646 = vlog2.pop %v1643
    %v1647 = vmul.f32 %v1646, 0.6931472
    %v1648 = vadd.f32 %v1631, %v1645
    %v1649 = vadd.f32 %v1633, %v1647
    %v1650 = vsub.f32 %v1631, %v1648
    %v1651 = vsub.f32 %v1633, %v1649
    %v1652 = vmul.f32 %v1637, %v1624
    %v1653 = vmul.f32 %v1639, %v1627
    %1654 = vadd.xlane.f32.xlu0 %v1652
    %v1655 = vpop.xlane.xlu0 %1654
    %1656 = vadd.xlane.f32.xlu0 %v1653
    %v1657 = vpop.xlane.xlu0 %1656
    %v1658 = vrcp.pop %v1641
    %v1659 = vmul.f32 %v1655, %v1658
    %v1660 = vrcp.pop %v1643
    %v1661 = vmul.f32 %v1657, %v1660
    %v1662 = vsub.f32 %v1648, %v1659
    %v1663 = vsub.f32 %v1649, %v1661
    %v1664 = vmax.f32 %v1662, 0.0
    %v1665 = vmax.f32 %v1663, 0.0
    %vm1666 = vcmp.eq.f32.partialorder %v1624, %v1631
    %vm1667 = vcmp.eq.f32.partialorder %v1627, %v1633
    %v1668 = vsel %vm1666, %v132, 128
    %v1669 = vsel %vm1667, %v132, 128
    %v1670 = vand.u32 %v1668, 65535
    %v1671 = vshra.s32 %v1668, 16
    %v1672 = vcvt.s32.f32 %v1670
    %v1673 = vcvt.s32.f32 %v1671
    %1674 = vmin.xlane.f32.xlu0 %v1673
    %v1675 = vpop.xlane.xlu0 %1674
    %vm1676 = vcmp.eq.f32.partialorder %v1673, %v1675
    %v1677 = vsel %vm1676, %v1672, inf
    %1678 = vmin.xlane.f32.xlu0 %v1677
    %v1679 = vpop.xlane.xlu0 %1678
    %v1680 = vcvt.f32.s32 %v1679
    %v1681 = vcvt.f32.s32 %v1675
    %v1682 = vshll.u32 %v1681, 16
    %v1683 = vadd.s32 %v1682, %v1680
    %v1684 = vand.u32 %v1669, 65535
    %v1685 = vshra.s32 %v1669, 16
    %v1686 = vcvt.s32.f32 %v1684
    %v1687 = vcvt.s32.f32 %v1685
    %1688 = vmin.xlane.f32.xlu0 %v1687
    %v1689 = vpop.xlane.xlu0 %1688
    %vm1690 = vcmp.eq.f32.partialorder %v1687, %v1689
    %v1691 = vsel %vm1690, %v1686, inf
    %1692 = vmin.xlane.f32.xlu0 %v1691
    %v1693 = vpop.xlane.xlu0 %1692
    %v1694 = vcvt.f32.s32 %v1693
    %v1695 = vcvt.f32.s32 %v1689
    %v1696 = vshll.u32 %v1695, 16
    %v1697 = vadd.s32 %v1696, %v1694
    %v1698 = vcvt.s32.f32 %v1683
    %v1699 = vcvt.s32.f32 %v1697
    %v1700 = vsel %vm654, %v1664, 0.0
    %v1701 = vsel %vm654, %v1665, 0.0
    %v1702 = vsel %vm653, %v1650, %v1700
    %v1703 = vsel %vm653, %v1651, %v1701
    %v1704 = vsel %vm650, %v1698, %v1702
    %v1705 = vsel %vm650, %v1699, %v1703
    %s1706 = scalar_lea.vmem [#allocation16], 32
    %1707 = vst [vmem:[%s1706] sm:$0xff] %v1704
    %1708 = vst [vmem:[%s1706 + $0x8] sm:$0xff] %v1705
    %1709 = vst [vmem:[#allocation13] sm:$0xff] %v1510
    %1710 = vst [vmem:[#allocation13 + $0x8] sm:$0xff] %v1511
    %1711 = vst [vmem:[#allocation14] sm:$0xff] %v1506
    %1712 = vst [vmem:[#allocation14 + $0x8] sm:$0xff] %v1507
    // Predicated region
    $region54: #{tpu_custom_call.1} parent=1 // pred_check
      _
    $region55: #{tpu_custom_call.1} parent=1 // pred_check_branch
      %1714 = sbr.rel (0) target = $region57
    $region56: #{tpu_custom_call.1} parent=1 // pred_region
      %s1716 = ssub.s32 256, 256
      %1717 = vsyncadd [#allocation4], %s1716
      %s1718 = sshll.u32 [#allocation13], 4
      %s1719 = int_to_ptr.vmem [resolvable:$true] %s1718
      %1724 = dma.vmem_to_hbm [thread:$0]  %s1719, 256, %s7, [#allocation4], 128, 128, 8
    $region57: #{tpu_custom_call.1} parent=1 // pred_fallthru
      _
    // Predicated region
    $region58: #{tpu_custom_call.1} parent=1 // pred_check
      _
    $region59: #{tpu_custom_call.1} parent=1 // pred_check_branch
      %1726 = sbr.rel (0) target = $region61
    $region60: #{tpu_custom_call.1} parent=1 // pred_region
      %s1728 = ssub.s32 256, 256
      %1729 = vsyncadd [#allocation15], %s1728
      %s1730 = sshll.u32 [#allocation14], 4
      %s1731 = int_to_ptr.vmem [resolvable:$true] %s1730
      %1736 = dma.vmem_to_hbm [thread:$0]  %s1731, 256, %s8, [#allocation15], 128, 128, 8
    $region61: #{tpu_custom_call.1} parent=1 // pred_fallthru
      _
    // Predicated region
    $region62: #{tpu_custom_call.1} parent=1 // pred_check
      _
    $region63: #{tpu_custom_call.1} parent=1 // pred_check_branch
      %1738 = sbr.rel (0) target = $region65
    $region64: #{tpu_custom_call.1} parent=1 // pred_region
      %s1740 = ssub.s32 768, 768
      %1741 = vsyncadd [#allocation15], %s1740
      %s1742 = sshll.u32 [#allocation16], 4
      %s1743 = int_to_ptr.vmem [resolvable:$true] %s1742
      %1748 = dma.vmem_to_hbm [thread:$0]  %s1743, 768, %s9, [#allocation15], 128, 128, 8
    $region65: #{tpu_custom_call.1} parent=1 // pred_fallthru
      _
    // Predicated region
    $region66: #{tpu_custom_call.1} parent=1 // pred_check
      _
    $region67: #{tpu_custom_call.1} parent=1 // pred_check_branch
      %1750 = sbr.rel (0) target = $region69
    $region68: #{tpu_custom_call.1} parent=1 // pred_region
      %1751 = dma.done [#allocation4], 256
    $region69: #{tpu_custom_call.1} parent=1 // pred_fallthru
      _
    // Predicated region
    $region70: #{tpu_custom_call.1} parent=1 // pred_check
      _
    $region71: #{tpu_custom_call.1} parent=1 // pred_check_branch
      %1753 = sbr.rel (0) target = $region73
    $region72: #{tpu_custom_call.1} parent=1 // pred_region
      %1754 = dma.done [#allocation15], 256
    $region73: #{tpu_custom_call.1} parent=1 // pred_fallthru
      _
    // Predicated region
    $region74: #{tpu_custom_call.1} parent=1 // pred_check
      _
    $region75: #{tpu_custom_call.1} parent=1 // pred_check_branch
      %1756 = sbr.rel (0) target = $region77
    $region76: #{tpu_custom_call.1} parent=1 // pred_region
      %1757 = dma.done [#allocation15], 768
    $region77: #{tpu_custom_call.1} parent=1 // pred_fallthru
      _
    %1758 = vsyncpa [#allocation3], 1
    %1759 = vsyncpa [#allocation8], 1
    %1760 = vsyncpa [#allocation11], 1
    %1761 = vsyncpa [#allocation4], 1
    %1762 = vsyncpa [#allocation15], 1
    %1763 = vsyncpa [#allocation5], 1

</llo_original>
